<compile_context>
chip_gen: v6e
topology: v6e:2x2x1
jax: 0.10.0
libtpu: 0.0.40
codegen_flags: <defaults>
</compile_context>

<pallas_src>
import functools

import jax
import jax.numpy as jnp
from jax.experimental import pallas as pl
from jax.experimental.pallas import tpu as pltpu


_SEG = 128                               # MXU cumsum segment (keeps flops negligible on v5e too)
_VMEM_TILE_BUDGET = 24 * 1024 * 1024     # working-set budget used for tile sizing
_VMEM_LIMIT = 32 * 1024 * 1024           # scoped VMEM limit (valid on v5e/v6e/v7x)


def _pick_tile(n, target, align=128):
    """Largest multiple of `align` that divides n and is <= target."""
    assert n % align == 0, f"pixel count {n} must be a multiple of {align}"
    target = max(align, (min(n, target) // align) * align)
    best = align
    for t in range(align, target + 1, align):
        if n % t == 0:
            best = t
    return best


def _pick_class_chunk(C):
    """Class-chunk size for kernel 2: multiple of 8 dividing C (or C itself)."""
    if C % 8 != 0 or C < 16:
        return C
    best = C
    for cc in range(8, C // 2 + 1, 8):
        if C % cc == 0:
            best = cc
    return best


# ----------------------------------------------------------------------------
# Kernel 1: softmax + negated lovasz errors (bf16) + per-image dice/CE partials
# ----------------------------------------------------------------------------
def _stats_kernel(x_ref, lbl_ref,
                  nerr_ref, inter_ref, sump_ref, cnt_ref, ce_ref,
                  acc_pg, acc_p, acc_ce, acc_cnt):
    i = pl.program_id(1)

    @pl.when(i == 0)                                  # re-init per image (B axis is parallel)
    def _():
        acc_pg[...] = jnp.zeros_like(acc_pg)
        acc_p[...] = jnp.zeros_like(acc_p)
        acc_ce[...] = jnp.zeros_like(acc_ce)
        acc_cnt[...] = jnp.zeros_like(acc_cnt)

    x = x_ref[0].astype(jnp.float32)                  # [C, TN] logits, upcast in-kernel
    lbl = lbl_ref[0]                                  # [1, TN] int32 labels

    # one-hot built in-kernel (no [C, N] one-hot DMA'd)
    cls = jax.lax.broadcasted_iota(jnp.int32, x.shape, 0)
    g = (cls == lbl).astype(jnp.float32)              # [C, TN]

    # softmax over the class (sublane) axis
    m = jnp.max(x, axis=0, keepdims=True)             # [1, TN]
    e = jnp.exp(x - m)
    s = jnp.sum(e, axis=0, keepdims=True)             # [1, TN]
    p = e * pl.reciprocal(s, approx=True)             # [C, TN]  (EUP reciprocal)

    # negated Lovász errors in bf16: ascending lax.sort on these == descending |err|
    nerr_ref[...] = (-jnp.abs(g - p)).astype(jnp.bfloat16)

    # lane-wide running sums; cross-lane reduction deferred to the last tile of the image
    acc_pg[...] += p * g
    acc_p[...] += p
    acc_cnt[...] += jnp.sum(g, axis=1, keepdims=True)          # per-class gt count, [C, 1]
    x_at = jnp.sum(x * g, axis=0, keepdims=True)               # logit at gt class, [1, TN]
    acc_ce[...] += (m + jnp.log(s)) - x_at                     # exact -log softmax at gt

    @pl.when(i == pl.num_programs(1) - 1)
    def _():
        inter_ref[0] = jnp.sum(acc_pg[...], axis=1, keepdims=True)
        sump_ref[0] = jnp.sum(acc_p[...], axis=1, keepdims=True)
        cnt_ref[0] = acc_cnt[...]
        ce_ref[0] = jnp.sum(acc_ce[...], axis=1, keepdims=True)


# ----------------------------------------------------------------------------
# Kernel 2: Lovász-softmax per-class loss from sorted (neg-)errors / sorted fg.
# MXU segmented cumsum + carried jaccard across pixel tiles.  Grid: (class chunks, tiles).
# ----------------------------------------------------------------------------
def _lovasz_kernel(gts_ref, nerr_ref, fg_ref, out_ref,
                   tri_ref, carry_fg, carry_jac, acc):
    t = pl.program_id(1)
    CC, TK = fg_ref.shape
    nseg = TK // _SEG

    @pl.when(t == 0)                                  # re-init per class chunk
    def _():
        row = jax.lax.broadcasted_iota(jnp.int32, (_SEG, _SEG), 0)
        col = jax.lax.broadcasted_iota(jnp.int32, (_SEG, _SEG), 1)
        tri_ref[...] = (row <= col).astype(jnp.bfloat16)        # tri[i, j] = 1 iff i <= j
        carry_fg[...] = jnp.zeros_like(carry_fg)
        carry_jac[...] = jnp.zeros_like(carry_jac)
        acc[...] = jnp.zeros_like(acc)

    fg = fg_ref[...]                                  # [CC, TK] bf16 fg (0/1), error-sorted
    nerr = nerr_ref[...].astype(jnp.float32)          # [CC, TK] negated sorted errors
    gts = gts_ref[...]                                # [CC, 1]  total fg count per class
    tri = tri_ref[...]

    # inclusive cumsum of fg along lanes: MXU matmul per 128-lane segment (bf16 in,
    # f32 accumulate, exact for 0/1 sums <= 128) + tiny carry chain over segment totals.
    running = carry_fg[...]                           # cumsum before this tile, [CC, 1]
    parts = []
    for s in range(nseg):
        seg_cum = jnp.dot(fg[:, s * _SEG:(s + 1) * _SEG], tri,
                          preferred_element_type=jnp.float32)   # [CC, SEG] segment-local cumsum
        parts.append(seg_cum + running)
        running = running + seg_cum[:, _SEG - 1:_SEG]
    cums_fg = jnp.concatenate(parts, axis=1)          # [CC, TK] global inclusive cumsum of fg

    lane = jax.lax.broadcasted_iota(jnp.int32, (CC, TK), 1)
    pos = (t * TK + lane + 1).astype(jnp.float32)     # global 1-based position
    union = gts + (pos - cums_fg)                     # gts + cumsum(1 - fg), >= 1 everywhere
    jac = 1.0 - (gts - cums_fg) * pl.reciprocal(union, approx=True)

    # lovasz_grad: discrete difference, carrying jac across tile boundaries
    jac_prev = pltpu.roll(jac, shift=1, axis=1)
    jac_prev = jnp.where(lane == 0, carry_jac[...], jac_prev)
    # nerr = -err  =>  err * (jac - jac_prev) == nerr * (jac_prev - jac)   (no extra negate)
    acc[...] += nerr * (jac_prev - jac)

    carry_fg[...] = running                           # == cums_fg[:, -1:]
    carry_jac[...] = jac[:, TK - 1:TK]                # static last-lane slice

    @pl.when(t == pl.num_programs(1) - 1)
    def _():
        out_ref[...] = jnp.sum(acc[...], axis=1, keepdims=True)


# ----------------------------------------------------------------------------
# Wrapper
# ----------------------------------------------------------------------------
@functools.partial(
    jax.jit,
    static_argnames=("dice_weight", "lovasz_weight", "ce_weight", "eps", "beta"),
)
def combined_dice_lovasz_ce_loss(
    logits_nchw,
    labels_bhw,
    dice_weight=1.0,
    lovasz_weight=1.0,
    ce_weight=1.0,
    eps=1e-6,
    beta=1.0,
):
    B, C, H, W = logits_nchw.shape
    HW = H * W
    N = B * HW

    # ---- kernel 1: VMEM-aware lane tile ----
    in_bytes = jnp.dtype(logits_nchw.dtype).itemsize
    # 2x dbl-buffered logits + 2x dbl-buffered bf16 err out + 2 f32 (C,TN) scratches + labels/ce
    per_lane = C * (2 * in_bytes + 2 * 2 + 2 * 4) + 3 * 4
    TN = _pick_tile(HW, target=min(8192, max(128, _VMEM_TILE_BUDGET // per_lane)))
    tiles_per_image = HW // TN

    # pure reshapes only — logits kept in their native dtype (bf16 stays bf16)
    logits = logits_nchw.reshape(B, C, HW)
    labels3 = labels_bhw.reshape(B, 1, HW).astype(jnp.int32)

    nerr, inter, sump, cnt, ce_sum = pl.pallas_call(
        _stats_kernel,
        out_shape=(
            jax.ShapeDtypeStruct((C, N), jnp.bfloat16),    # NEGATED lovasz errors, (b,h,w) order
            jax.ShapeDtypeStruct((B, C, 1), jnp.float32),  # per-image sum(p * onehot)
            jax.ShapeDtypeStruct((B, C, 1), jnp.float32),  # per-image sum(p)
            jax.ShapeDtypeStruct((B, C, 1), jnp.float32),  # per-image gt pixel counts
            jax.ShapeDtypeStruct((B, 1, 1), jnp.float32),  # per-image summed cross entropy
        ),
        grid_spec=pltpu.PrefetchScalarGridSpec(
            num_scalar_prefetch=0,
            grid=(B, tiles_per_image),
            in_specs=[
                pl.BlockSpec((1, C, TN), lambda b, i: (b, 0, i)),
                pl.BlockSpec((1, 1, TN), lambda b, i: (b, 0, i)),
            ],
            out_specs=[
                pl.BlockSpec((C, TN), lambda b, i: (0, b * tiles_per_image + i)),
                pl.BlockSpec((1, C, 1), lambda b, i: (b, 0, 0)),
                pl.BlockSpec((1, C, 1), lambda b, i: (b, 0, 0)),
                pl.BlockSpec((1, C, 1), lambda b, i: (b, 0, 0)),
                pl.BlockSpec((1, 1, 1), lambda b, i: (b, 0, 0)),
            ],
            scratch_shapes=[
                pltpu.VMEM((C, TN), jnp.float32),   # acc p*g
                pltpu.VMEM((C, TN), jnp.float32),   # acc p
                pltpu.VMEM((1, TN), jnp.float32),   # acc cross-entropy
                pltpu.VMEM((C, 1), jnp.float32),    # acc gt counts
            ],
        ),
        compiler_params=pltpu.CompilerParams(
            dimension_semantics=("parallel", "arbitrary"),   # images split across v7x cores
            vmem_limit_bytes=_VMEM_LIMIT),
    )(logits, labels3)

    # ---- Dice loss (activation='softmax', beta, eps) ----
    inter_c = jnp.sum(inter[:, :, 0], axis=0)
    sum_p_c = jnp.sum(sump[:, :, 0], axis=0)
    count_c = jnp.sum(cnt[:, :, 0], axis=0)
    fp = sum_p_c - inter_c
    fn = count_c - inter_c
    b2 = beta * beta
    dice_per_class = ((1.0 + b2) * inter_c + eps) / (
        (1.0 + b2) * inter_c + b2 * fn + fp + eps
    )
    dice_loss = 1.0 - jnp.mean(dice_per_class)

    # ---- Cross entropy (reduction='mean', ignore=None) ----
    ce_loss = jnp.sum(ce_sum) / N

    # ---- Lovász-Softmax (classes='all', per_image=False, ignore=None) ----
    # One multi-operand co-sort: ascending on negated errors == descending on |err|,
    # fg carried along — no argsort, no gathers, no f32 error materialization.
    # TODO(synk): no Pallas TPU sort primitive; XLA lax.sort used here.
    labels_flat = labels3.reshape(N)
    fg = (labels_flat[None, :] ==
          jnp.arange(C, dtype=jnp.int32)[:, None]).astype(jnp.bfloat16)       # [C, N]
    nerr_sorted, fg_sorted = jax.lax.sort(
        (nerr, fg), dimension=1, is_stable=False, num_keys=1)

    CC = _pick_class_chunk(C)
    per_lane2 = CC * (2 * 2 + 2 * 2 + 4)     # dbl-buf bf16 err + dbl-buf bf16 fg + f32 acc
    TK = _pick_tile(
        N, target=min(4096, max(128, (_VMEM_TILE_BUDGET - _SEG * _SEG * 2) // per_lane2)))

    gts = jnp.sum(cnt, axis=0)               # [C, 1] total gt pixels per class

    lovasz_per_class = pl.pallas_call(
        _lovasz_kernel,
        out_shape=jax.ShapeDtypeStruct((C, 1), jnp.float32),
        grid_spec=pltpu.PrefetchScalarGridSpec(
            num_scalar_prefetch=0,
            grid=(C // CC, N // TK),
            in_specs=[
                pl.BlockSpec((CC, 1), lambda c, t: (c, 0)),     # gts per class chunk
                pl.BlockSpec((CC, TK), lambda c, t: (c, t)),    # sorted neg-errors (bf16)
                pl.BlockSpec((CC, TK), lambda c, t: (c, t)),    # sorted fg (bf16)
            ],
            out_specs=pl.BlockSpec((CC, 1), lambda c, t: (c, 0)),
            scratch_shapes=[
                pltpu.VMEM((_SEG, _SEG), jnp.bfloat16),  # triangular ones (MXU cumsum)
                pltpu.VMEM((CC, 1), jnp.float32),        # carry: cumulative fg count
                pltpu.VMEM((CC, 1), jnp.float32),        # carry: jaccard at previous position
                pltpu.VMEM((CC, TK), jnp.float32),       # lane-wide loss accumulator
            ],
        ),
        compiler_params=pltpu.CompilerParams(
            dimension_semantics=("parallel", "arbitrary"),
            vmem_limit_bytes=_VMEM_LIMIT),
    )(gts, nerr_sorted, fg_sorted)
    lovasz_loss = jnp.mean(lovasz_per_class[:, 0])

    return (
        dice_weight * dice_loss + ce_weight * ce_loss + lovasz_weight * lovasz_loss
    )


# ----------------------------------------------------------------------------
# Pure-JAX reference (mirrors the PyTorch module) for a sanity check.
# ----------------------------------------------------------------------------
def _reference_loss(logits, labels, dice_weight=1.0, lovasz_weight=1.0,
                    ce_weight=1.0, eps=1e-6, beta=1.0):
    B, C, H, W = logits.shape
    x = logits.astype(jnp.float32)
    p = jax.nn.softmax(x, axis=1)
    g = jax.nn.one_hot(labels, C, axis=1, dtype=jnp.float32)
    inter = jnp.sum(p * g, axis=(0, 2, 3))
    fp = jnp.sum(p * (1.0 - g), axis=(0, 2, 3))
    fn = jnp.sum((1.0 - p) * g, axis=(0, 2, 3))
    b2 = beta * beta
    dice = ((1.0 + b2) * inter + eps) / ((1.0 + b2) * inter + b2 * fn + fp + eps)
    dice_loss = 1.0 - jnp.mean(dice)
    logp = jax.nn.log_softmax(x, axis=1)
    ce_loss = -jnp.mean(jnp.sum(logp * g, axis=1))
    pf = jnp.transpose(p, (0, 2, 3, 1)).reshape(-1, C)
    lf = labels.reshape(-1)
    losses = []
    for c in range(C):
        fg = (lf == c).astype(jnp.float32)
        err = jnp.abs(fg - pf[:, c])
        order = jnp.argsort(-err)
        err_s = err[order]
        fg_s = fg[order]
        gts = jnp.sum(fg_s)
        inter_ = gts - jnp.cumsum(fg_s)
        union_ = gts + jnp.cumsum(1.0 - fg_s)
        jac = 1.0 - inter_ / union_
        grad = jnp.concatenate([jac[:1], jac[1:] - jac[:-1]])
        losses.append(jnp.sum(err_s * grad))
    lovasz_loss = jnp.mean(jnp.stack(losses))
    return dice_weight * dice_loss + ce_weight * ce_loss + lovasz_weight * lovasz_loss


if __name__ == "__main__":
    # Small deterministic example: B=2, C=4, H=W=16  (N = 512 pixels)
    key = jax.random.PRNGKey(0)
    k1, k2 = jax.random.split(key)
    B, C, H, W = 2, 4, 16, 16
    y_pr = jax.random.normal(k1, (B, C, H, W), dtype=jnp.float32)      # logits
    y_gt = jax.random.randint(k2, (B, H, W), 0, C, dtype=jnp.int32)    # labels

    loss = combined_dice_lovasz_ce_loss(y_pr, y_gt)
    jax.block_until_ready(loss)
    assert loss.shape == () and bool(jnp.isfinite(loss))

    # loose tolerance: bf16 errors + approx reciprocals perturb the loss slightly
    ref = _reference_loss(y_pr, y_gt)
    assert abs(float(loss) - float(ref)) < 5e-2, (float(loss), float(ref))

    print("KERNEL_OK")
</pallas_src>

<mosaic_0001>
module attributes {stable_mosaic.version = 11 : i64} {
  func.func @_stats_kernel(%arg0: i32, %arg1: i32, %arg2: memref<1x4x256xf32, #tpu.memory_space<vmem>>, %arg3: memref<1x1x256xi32, #tpu.memory_space<vmem>>, %arg4: memref<4x256xbf16, #tpu.memory_space<vmem>>, %arg5: memref<1x4x1xf32, #tpu.memory_space<vmem>>, %arg6: memref<1x4x1xf32, #tpu.memory_space<vmem>>, %arg7: memref<1x4x1xf32, #tpu.memory_space<vmem>>, %arg8: memref<1x1x1xf32, #tpu.memory_space<vmem>>, %arg9: memref<4x256xf32, #tpu.memory_space<vmem>>, %arg10: memref<4x256xf32, #tpu.memory_space<vmem>>, %arg11: memref<1x256xf32, #tpu.memory_space<vmem>>, %arg12: memref<4x1xf32, #tpu.memory_space<vmem>>) attributes {dimension_semantics = [#tpu.dimension_semantics<parallel>, #tpu.dimension_semantics<arbitrary>], iteration_bounds = array<i64: 2, 1>, scalar_prefetch = 0 : i64, scratch_operands = 4 : i64, tpu.core_type = #tpu.core_type<tc>, window_params = [{transform_indices = @transform_0, window_bounds = array<i64: 1, 4, 256>}, {transform_indices = @transform_1, window_bounds = array<i64: 1, 1, 256>}, {transform_indices = @transform_2, window_bounds = array<i64: 4, 256>}, {transform_indices = @transform_3, window_bounds = array<i64: 1, 4, 1>}, {transform_indices = @transform_4, window_bounds = array<i64: 1, 4, 1>}, {transform_indices = @transform_5, window_bounds = array<i64: 1, 4, 1>}, {transform_indices = @transform_6, window_bounds = array<i64: 1, 1, 1>}]} {
    %c0_i32 = arith.constant 0 : i32
    %0 = arith.cmpi eq, %arg1, %c0_i32 : i32
    %1 = arith.extui %0 : i1 to i32
    %c0_i32_0 = arith.constant 0 : i32
    %2 = arith.cmpi ne, %1, %c0_i32_0 : i32
    scf.if %2 {
      %cst_30 = arith.constant 0.000000e+00 : f32
      %52 = vector.broadcast %cst_30 : f32 to vector<4x256xf32>
      %c0_31 = arith.constant 0 : index
      %c0_32 = arith.constant 0 : index
      %53 = vector.load %arg9[%c0_31, %c0_32] : memref<4x256xf32, #tpu.memory_space<vmem>>, vector<4x256xf32>
      tpu.vector_store %arg9[%c0_31, %c0_32], %52 {strides = array<i32>} : memref<4x256xf32, #tpu.memory_space<vmem>>, vector<4x256xf32>,
      %cst_33 = arith.constant 0.000000e+00 : f32
      %54 = vector.broadcast %cst_33 : f32 to vector<4x256xf32>
      %c0_34 = arith.constant 0 : index
      %c0_35 = arith.constant 0 : index
      %55 = vector.load %arg10[%c0_34, %c0_35] : memref<4x256xf32, #tpu.memory_space<vmem>>, vector<4x256xf32>
      tpu.vector_store %arg10[%c0_34, %c0_35], %54 {strides = array<i32>} : memref<4x256xf32, #tpu.memory_space<vmem>>, vector<4x256xf32>,
      %cst_36 = arith.constant 0.000000e+00 : f32
      %56 = vector.broadcast %cst_36 : f32 to vector<1x256xf32>
      %c0_37 = arith.constant 0 : index
      %c0_38 = arith.constant 0 : index
      %57 = vector.load %arg11[%c0_37, %c0_38] : memref<1x256xf32, #tpu.memory_space<vmem>>, vector<1x256xf32>
      tpu.vector_store %arg11[%c0_37, %c0_38], %56 {strides = array<i32>} : memref<1x256xf32, #tpu.memory_space<vmem>>, vector<1x256xf32>,
      %cst_39 = arith.constant 0.000000e+00 : f32
      %58 = vector.broadcast %cst_39 : f32 to vector<4x1xf32>
      %c0_40 = arith.constant 0 : index
      %c0_41 = arith.constant 0 : index
      %59 = vector.load %arg12[%c0_40, %c0_41] : memref<4x1xf32, #tpu.memory_space<vmem>>, vector<4x1xf32>
      tpu.vector_store %arg12[%c0_40, %c0_41], %58 {strides = array<i32>} : memref<4x1xf32, #tpu.memory_space<vmem>>, vector<4x1xf32>,
    } else {
    }
    %c0 = arith.constant 0 : index
    %c0_1 = arith.constant 0 : index
    %c0_2 = arith.constant 0 : index
    %3 = vector.load %arg2[%c0, %c0_1, %c0_2] : memref<1x4x256xf32, #tpu.memory_space<vmem>>, vector<1x4x256xf32>
    %4 = vector.shape_cast %3 : vector<1x4x256xf32> to vector<4x256xf32>
    %c0_3 = arith.constant 0 : index
    %c0_4 = arith.constant 0 : index
    %c0_5 = arith.constant 0 : index
    %5 = vector.load %arg3[%c0_3, %c0_4, %c0_5] : memref<1x1x256xi32, #tpu.memory_space<vmem>>, vector<1x1x256xi32>
    %6 = vector.shape_cast %5 : vector<1x1x256xi32> to vector<1x256xi32>
    %7 = tpu.iota {dimensions = array<i32: 0>} : vector<4x256xi32>
    %8 = vector.broadcast %6 : vector<1x256xi32> to vector<4x256xi32>
    %9 = arith.cmpi eq, %7, %8 : vector<4x256xi32>
    %10 = arith.extui %9 : vector<4x256xi1> to vector<4x256xi32>
    %11 = arith.sitofp %10 : vector<4x256xi32> to vector<4x256xf32>
    %cst = arith.constant dense<0xFF800000> : vector<256xf32>
    %12 = vector.multi_reduction <maximumf>, %4, %cst [0] : vector<4x256xf32> to vector<256xf32>
    %13 = vector.shape_cast %12 : vector<256xf32> to vector<1x256xf32>
    %14 = vector.broadcast %13 : vector<1x256xf32> to vector<4x256xf32>
    %15 = arith.subf %4, %14 : vector<4x256xf32>
    %16 = math.exp %15 : vector<4x256xf32>
    %cst_6 = arith.constant dense<0.000000e+00> : vector<256xf32>
    %17 = vector.multi_reduction <add>, %16, %cst_6 [0] : vector<4x256xf32> to vector<256xf32>
    %18 = vector.shape_cast %17 : vector<256xf32> to vector<1x256xf32>
    %19 = tpu.reciprocal %18 {approx = true} : vector<1x256xf32> -> vector<1x256xf32>
    %20 = vector.broadcast %19 : vector<1x256xf32> to vector<4x256xf32>
    %21 = arith.mulf %16, %20 : vector<4x256xf32>
    %22 = arith.subf %11, %21 : vector<4x256xf32>
    %23 = math.absf %22 : vector<4x256xf32>
    %cst_7 = arith.constant 0.000000e+00 : f32
    %24 = vector.broadcast %cst_7 : f32 to vector<4x256xf32>
    %25 = arith.subf %24, %23 : vector<4x256xf32>
    %26 = arith.truncf %25 : vector<4x256xf32> to vector<4x256xbf16>
    %c0_8 = arith.constant 0 : index
    %c0_9 = arith.constant 0 : index
    %27 = vector.load %arg4[%c0_8, %c0_9] : memref<4x256xbf16, #tpu.memory_space<vmem>>, vector<4x256xbf16>
    tpu.vector_store %arg4[%c0_8, %c0_9], %26 {strides = array<i32>} : memref<4x256xbf16, #tpu.memory_space<vmem>>, vector<4x256xbf16>,
    %c0_10 = arith.constant 0 : index
    %c0_11 = arith.constant 0 : index
    %28 = vector.load %arg9[%c0_10, %c0_11] : memref<4x256xf32, #tpu.memory_space<vmem>>, vector<4x256xf32>
    %29 = arith.mulf %21, %11 : vector<4x256xf32>
    %30 = arith.addf %28, %29 : vector<4x256xf32>
    %c0_12 = arith.constant 0 : index
    %c0_13 = arith.constant 0 : index
    %31 = vector.load %arg9[%c0_12, %c0_13] : memref<4x256xf32, #tpu.memory_space<vmem>>, vector<4x256xf32>
    tpu.vector_store %arg9[%c0_12, %c0_13], %30 {strides = array<i32>} : memref<4x256xf32, #tpu.memory_space<vmem>>, vector<4x256xf32>,
    %c0_14 = arith.constant 0 : index
    %c0_15 = arith.constant 0 : index
    %32 = vector.load %arg10[%c0_14, %c0_15] : memref<4x256xf32, #tpu.memory_space<vmem>>, vector<4x256xf32>
    %33 = arith.addf %32, %21 : vector<4x256xf32>
    %c0_16 = arith.constant 0 : index
    %c0_17 = arith.constant 0 : index
    %34 = vector.load %arg10[%c0_16, %c0_17] : memref<4x256xf32, #tpu.memory_space<vmem>>, vector<4x256xf32>
    tpu.vector_store %arg10[%c0_16, %c0_17], %33 {strides = array<i32>} : memref<4x256xf32, #tpu.memory_space<vmem>>, vector<4x256xf32>,
    %c0_18 = arith.constant 0 : index
    %c0_19 = arith.constant 0 : index
    %35 = vector.load %arg12[%c0_18, %c0_19] : memref<4x1xf32, #tpu.memory_space<vmem>>, vector<4x1xf32>
    %cst_20 = arith.constant dense<0.000000e+00> : vector<4xf32>
    %36 = vector.multi_reduction <add>, %11, %cst_20 [1] : vector<4x256xf32> to vector<4xf32>
    %37 = vector.shape_cast %36 : vector<4xf32> to vector<4x1xf32>
    %38 = arith.addf %35, %37 : vector<4x1xf32>
    %c0_21 = arith.constant 0 : index
    %c0_22 = arith.constant 0 : index
    %39 = vector.load %arg12[%c0_21, %c0_22] : memref<4x1xf32, #tpu.memory_space<vmem>>, vector<4x1xf32>
    tpu.vector_store %arg12[%c0_21, %c0_22], %38 {strides = array<i32>} : memref<4x1xf32, #tpu.memory_space<vmem>>, vector<4x1xf32>,
    %40 = arith.mulf %4, %11 : vector<4x256xf32>
    %cst_23 = arith.constant dense<0.000000e+00> : vector<256xf32>
    %41 = vector.multi_reduction <add>, %40, %cst_23 [0] : vector<4x256xf32> to vector<256xf32>
    %42 = vector.shape_cast %41 : vector<256xf32> to vector<1x256xf32>
    %c0_24 = arith.constant 0 : index
    %c0_25 = arith.constant 0 : index
    %43 = vector.load %arg11[%c0_24, %c0_25] : memref<1x256xf32, #tpu.memory_space<vmem>>, vector<1x256xf32>
    %44 = math.log %18 : vector<1x256xf32>
    %45 = arith.addf %13, %44 : vector<1x256xf32>
    %46 = arith.subf %45, %42 : vector<1x256xf32>
    %47 = arith.addf %43, %46 : vector<1x256xf32>
    %c0_26 = arith.constant 0 : index
    %c0_27 = arith.constant 0 : index
    %48 = vector.load %arg11[%c0_26, %c0_27] : memref<1x256xf32, #tpu.memory_space<vmem>>, vector<1x256xf32>
    tpu.vector_store %arg11[%c0_26, %c0_27], %47 {strides = array<i32>} : memref<1x256xf32, #tpu.memory_space<vmem>>, vector<1x256xf32>,
    %c0_i32_28 = arith.constant 0 : i32
    %49 = arith.cmpi eq, %arg1, %c0_i32_28 : i32
    %50 = arith.extui %49 : i1 to i32
    %c0_i32_29 = arith.constant 0 : i32
    %51 = arith.cmpi ne, %50, %c0_i32_29 : i32
    scf.if %51 {
      %c0_30 = arith.constant 0 : index
      %c0_31 = arith.constant 0 : index
      %52 = vector.load %arg9[%c0_30, %c0_31] : memref<4x256xf32, #tpu.memory_space<vmem>>, vector<4x256xf32>
      %cst_32 = arith.constant dense<0.000000e+00> : vector<4xf32>
      %53 = vector.multi_reduction <add>, %52, %cst_32 [1] : vector<4x256xf32> to vector<4xf32>
      %54 = vector.shape_cast %53 : vector<4xf32> to vector<4x1xf32>
      %c0_33 = arith.constant 0 : index
      %c0_34 = arith.constant 0 : index
      %c0_35 = arith.constant 0 : index
      %55 = vector.load %arg5[%c0_33, %c0_34, %c0_35] : memref<1x4x1xf32, #tpu.memory_space<vmem>>, vector<1x4x1xf32>
      %56 = vector.shape_cast %55 : vector<1x4x1xf32> to vector<4x1xf32>
      %57 = vector.shape_cast %54 : vector<4x1xf32> to vector<1x4x1xf32>
      tpu.vector_store %arg5[%c0_33, %c0_34, %c0_35], %57 {strides = array<i32>} : memref<1x4x1xf32, #tpu.memory_space<vmem>>, vector<1x4x1xf32>,
      %c0_36 = arith.constant 0 : index
      %c0_37 = arith.constant 0 : index
      %58 = vector.load %arg10[%c0_36, %c0_37] : memref<4x256xf32, #tpu.memory_space<vmem>>, vector<4x256xf32>
      %cst_38 = arith.constant dense<0.000000e+00> : vector<4xf32>
      %59 = vector.multi_reduction <add>, %58, %cst_38 [1] : vector<4x256xf32> to vector<4xf32>
      %60 = vector.shape_cast %59 : vector<4xf32> to vector<4x1xf32>
      %c0_39 = arith.constant 0 : index
      %c0_40 = arith.constant 0 : index
      %c0_41 = arith.constant 0 : index
      %61 = vector.load %arg6[%c0_39, %c0_40, %c0_41] : memref<1x4x1xf32, #tpu.memory_space<vmem>>, vector<1x4x1xf32>
      %62 = vector.shape_cast %61 : vector<1x4x1xf32> to vector<4x1xf32>
      %63 = vector.shape_cast %60 : vector<4x1xf32> to vector<1x4x1xf32>
      tpu.vector_store %arg6[%c0_39, %c0_40, %c0_41], %63 {strides = array<i32>} : memref<1x4x1xf32, #tpu.memory_space<vmem>>, vector<1x4x1xf32>,
      %c0_42 = arith.constant 0 : index
      %c0_43 = arith.constant 0 : index
      %64 = vector.load %arg12[%c0_42, %c0_43] : memref<4x1xf32, #tpu.memory_space<vmem>>, vector<4x1xf32>
      %c0_44 = arith.constant 0 : index
      %c0_45 = arith.constant 0 : index
      %c0_46 = arith.constant 0 : index
      %65 = vector.load %arg7[%c0_44, %c0_45, %c0_46] : memref<1x4x1xf32, #tpu.memory_space<vmem>>, vector<1x4x1xf32>
      %66 = vector.shape_cast %65 : vector<1x4x1xf32> to vector<4x1xf32>
      %67 = vector.shape_cast %64 : vector<4x1xf32> to vector<1x4x1xf32>
      tpu.vector_store %arg7[%c0_44, %c0_45, %c0_46], %67 {strides = array<i32>} : memref<1x4x1xf32, #tpu.memory_space<vmem>>, vector<1x4x1xf32>,
      %c0_47 = arith.constant 0 : index
      %c0_48 = arith.constant 0 : index
      %68 = vector.load %arg11[%c0_47, %c0_48] : memref<1x256xf32, #tpu.memory_space<vmem>>, vector<1x256xf32>
      %cst_49 = arith.constant dense<0.000000e+00> : vector<1xf32>
      %69 = vector.multi_reduction <add>, %68, %cst_49 [1] : vector<1x256xf32> to vector<1xf32>
      %70 = vector.shape_cast %69 : vector<1xf32> to vector<1x1xf32>
      %c0_50 = arith.constant 0 : index
      %c0_51 = arith.constant 0 : index
      %c0_52 = arith.constant 0 : index
      %71 = vector.load %arg8[%c0_50, %c0_51, %c0_52] : memref<1x1x1xf32, #tpu.memory_space<vmem>>, vector<1x1x1xf32>
      %72 = vector.shape_cast %71 : vector<1x1x1xf32> to vector<1x1xf32>
      %73 = vector.shape_cast %70 : vector<1x1xf32> to vector<1x1x1xf32>
      tpu.vector_store %arg8[%c0_50, %c0_51, %c0_52], %73 {strides = array<i32>} : memref<1x1x1xf32, #tpu.memory_space<vmem>>, vector<1x1x1xf32>,
    } else {
    }
    return
  }
  func.func @transform_0(%arg0: i32, %arg1: i32) -> (i32, i32, i32) {
    %c0_i32 = arith.constant 0 : i32
    %c0_i32_0 = arith.constant 0 : i32
    return %arg0, %c0_i32, %arg1 : i32, i32, i32
  }
  func.func @transform_1(%arg0: i32, %arg1: i32) -> (i32, i32, i32) {
    %c0_i32 = arith.constant 0 : i32
    %c0_i32_0 = arith.constant 0 : i32
    return %arg0, %c0_i32, %arg1 : i32, i32, i32
  }
  func.func @transform_2(%arg0: i32, %arg1: i32) -> (i32, i32) {
    %c1_i32 = arith.constant 1 : i32
    %0 = arith.muli %arg0, %c1_i32 : i32
    %1 = arith.addi %0, %arg1 : i32
    %c0_i32 = arith.constant 0 : i32
    %c0_i32_0 = arith.constant 0 : i32
    return %c0_i32, %1 : i32, i32
  }
  func.func @transform_3(%arg0: i32, %arg1: i32) -> (i32, i32, i32) {
    %c0_i32 = arith.constant 0 : i32
    %c0_i32_0 = arith.constant 0 : i32
    %c0_i32_1 = arith.constant 0 : i32
    return %arg0, %c0_i32, %c0_i32_0 : i32, i32, i32
  }
  func.func @transform_4(%arg0: i32, %arg1: i32) -> (i32, i32, i32) {
    %c0_i32 = arith.constant 0 : i32
    %c0_i32_0 = arith.constant 0 : i32
    %c0_i32_1 = arith.constant 0 : i32
    return %arg0, %c0_i32, %c0_i32_0 : i32, i32, i32
  }
  func.func @transform_5(%arg0: i32, %arg1: i32) -> (i32, i32, i32) {
    %c0_i32 = arith.constant 0 : i32
    %c0_i32_0 = arith.constant 0 : i32
    %c0_i32_1 = arith.constant 0 : i32
    return %arg0, %c0_i32, %c0_i32_0 : i32, i32, i32
  }
  func.func @transform_6(%arg0: i32, %arg1: i32) -> (i32, i32, i32) {
    %c0_i32 = arith.constant 0 : i32
    %c0_i32_0 = arith.constant 0 : i32
    %c0_i32_1 = arith.constant 0 : i32
    return %arg0, %c0_i32, %c0_i32_0 : i32, i32, i32
  }
}

module attributes {stable_mosaic.version = 11 : i64} {
  func.func @_lovasz_kernel(%arg0: i32, %arg1: i32, %arg2: memref<4x1xf32, #tpu.memory_space<vmem>>, %arg3: memref<4x512xbf16, #tpu.memory_space<vmem>>, %arg4: memref<4x512xbf16, #tpu.memory_space<vmem>>, %arg5: memref<4x1xf32, #tpu.memory_space<vmem>>, %arg6: memref<128x128xbf16, #tpu.memory_space<vmem>>, %arg7: memref<4x1xf32, #tpu.memory_space<vmem>>, %arg8: memref<4x1xf32, #tpu.memory_space<vmem>>, %arg9: memref<4x512xf32, #tpu.memory_space<vmem>>) attributes {dimension_semantics = [#tpu.dimension_semantics<parallel>, #tpu.dimension_semantics<arbitrary>], iteration_bounds = array<i64: 1, 1>, scalar_prefetch = 0 : i64, scratch_operands = 4 : i64, tpu.core_type = #tpu.core_type<tc>, window_params = [{transform_indices = @transform_0, window_bounds = array<i64: 4, 1>}, {transform_indices = @transform_1, window_bounds = array<i64: 4, 512>}, {transform_indices = @transform_2, window_bounds = array<i64: 4, 512>}, {transform_indices = @transform_3, window_bounds = array<i64: 4, 1>}]} {
    %c0_i32 = arith.constant 0 : i32
    %0 = arith.cmpi eq, %arg1, %c0_i32 : i32
    %1 = arith.extui %0 : i1 to i32
    %c0_i32_0 = arith.constant 0 : i32
    %2 = arith.cmpi ne, %1, %c0_i32_0 : i32
    scf.if %2 {
      %68 = tpu.iota {dimensions = array<i32: 0>} : vector<128x128xi32>
      %69 = tpu.iota {dimensions = array<i32: 1>} : vector<128x128xi32>
      %70 = arith.cmpi sle, %68, %69 : vector<128x128xi32>
      %71 = arith.extui %70 : vector<128x128xi1> to vector<128x128xi32>
      %72 = arith.sitofp %71 : vector<128x128xi32> to vector<128x128xf32>
      %73 = arith.truncf %72 : vector<128x128xf32> to vector<128x128xbf16>
      %c0_28 = arith.constant 0 : index
      %c0_29 = arith.constant 0 : index
      %74 = vector.load %arg6[%c0_28, %c0_29] : memref<128x128xbf16, #tpu.memory_space<vmem>>, vector<128x128xbf16>
      tpu.vector_store %arg6[%c0_28, %c0_29], %73 {strides = array<i32>} : memref<128x128xbf16, #tpu.memory_space<vmem>>, vector<128x128xbf16>,
      %cst_30 = arith.constant 0.000000e+00 : f32
      %75 = vector.broadcast %cst_30 : f32 to vector<4x1xf32>
      %c0_31 = arith.constant 0 : index
      %c0_32 = arith.constant 0 : index
      %76 = vector.load %arg7[%c0_31, %c0_32] : memref<4x1xf32, #tpu.memory_space<vmem>>, vector<4x1xf32>
      tpu.vector_store %arg7[%c0_31, %c0_32], %75 {strides = array<i32>} : memref<4x1xf32, #tpu.memory_space<vmem>>, vector<4x1xf32>,
      %cst_33 = arith.constant 0.000000e+00 : f32
      %77 = vector.broadcast %cst_33 : f32 to vector<4x1xf32>
      %c0_34 = arith.constant 0 : index
      %c0_35 = arith.constant 0 : index
      %78 = vector.load %arg8[%c0_34, %c0_35] : memref<4x1xf32, #tpu.memory_space<vmem>>, vector<4x1xf32>
      tpu.vector_store %arg8[%c0_34, %c0_35], %77 {strides = array<i32>} : memref<4x1xf32, #tpu.memory_space<vmem>>, vector<4x1xf32>,
      %cst_36 = arith.constant 0.000000e+00 : f32
      %79 = vector.broadcast %cst_36 : f32 to vector<4x512xf32>
      %c0_37 = arith.constant 0 : index
      %c0_38 = arith.constant 0 : index
      %80 = vector.load %arg9[%c0_37, %c0_38] : memref<4x512xf32, #tpu.memory_space<vmem>>, vector<4x512xf32>
      tpu.vector_store %arg9[%c0_37, %c0_38], %79 {strides = array<i32>} : memref<4x512xf32, #tpu.memory_space<vmem>>, vector<4x512xf32>,
    } else {
    }
    %c0 = arith.constant 0 : index
    %c0_1 = arith.constant 0 : index
    %3 = vector.load %arg4[%c0, %c0_1] : memref<4x512xbf16, #tpu.memory_space<vmem>>, vector<4x512xbf16>
    %c0_2 = arith.constant 0 : index
    %c0_3 = arith.constant 0 : index
    %4 = vector.load %arg3[%c0_2, %c0_3] : memref<4x512xbf16, #tpu.memory_space<vmem>>, vector<4x512xbf16>
    %5 = arith.extf %4 : vector<4x512xbf16> to vector<4x512xf32>
    %c0_4 = arith.constant 0 : index
    %c0_5 = arith.constant 0 : index
    %6 = vector.load %arg2[%c0_4, %c0_5] : memref<4x1xf32, #tpu.memory_space<vmem>>, vector<4x1xf32>
    %c0_6 = arith.constant 0 : index
    %c0_7 = arith.constant 0 : index
    %7 = vector.load %arg6[%c0_6, %c0_7] : memref<128x128xbf16, #tpu.memory_space<vmem>>, vector<128x128xbf16>
    %c0_8 = arith.constant 0 : index
    %c0_9 = arith.constant 0 : index
    %8 = vector.load %arg7[%c0_8, %c0_9] : memref<4x1xf32, #tpu.memory_space<vmem>>, vector<4x1xf32>
    %9 = vector.extract_strided_slice %3 {offsets = [0, 0], sizes = [4, 128], strides = [1, 1]} : vector<4x512xbf16> to vector<4x128xbf16>
    %cst = arith.constant dense<0.000000e+00> : vector<4x128xf32>
    %10 = tpu.matmul %9, %7, %cst {dimension_numbers = #tpu.dot_dimension_numbers<[1], [0], [0], [1], [0, 0, 1, 1], [], []>} : vector<4x128xbf16>, vector<128x128xbf16>, vector<4x128xf32> -> vector<4x128xf32>
    %11 = vector.broadcast %8 : vector<4x1xf32> to vector<4x128xf32>
    %12 = arith.addf %10, %11 : vector<4x128xf32>
    %13 = vector.extract_strided_slice %10 {offsets = [0, 127], sizes = [4, 1], strides = [1, 1]} : vector<4x128xf32> to vector<4x1xf32>
    %14 = arith.addf %8, %13 : vector<4x1xf32>
    %15 = vector.extract_strided_slice %3 {offsets = [0, 128], sizes = [4, 128], strides = [1, 1]} : vector<4x512xbf16> to vector<4x128xbf16>
    %cst_10 = arith.constant dense<0.000000e+00> : vector<4x128xf32>
    %16 = tpu.matmul %15, %7, %cst_10 {dimension_numbers = #tpu.dot_dimension_numbers<[1], [0], [0], [1], [0, 0, 1, 1], [], []>} : vector<4x128xbf16>, vector<128x128xbf16>, vector<4x128xf32> -> vector<4x128xf32>
    %17 = vector.broadcast %14 : vector<4x1xf32> to vector<4x128xf32>
    %18 = arith.addf %16, %17 : vector<4x128xf32>
    %19 = vector.extract_strided_slice %16 {offsets = [0, 127], sizes = [4, 1], strides = [1, 1]} : vector<4x128xf32> to vector<4x1xf32>
    %20 = arith.addf %14, %19 : vector<4x1xf32>
    %21 = vector.extract_strided_slice %3 {offsets = [0, 256], sizes = [4, 128], strides = [1, 1]} : vector<4x512xbf16> to vector<4x128xbf16>
    %cst_11 = arith.constant dense<0.000000e+00> : vector<4x128xf32>
    %22 = tpu.matmul %21, %7, %cst_11 {dimension_numbers = #tpu.dot_dimension_numbers<[1], [0], [0], [1], [0, 0, 1, 1], [], []>} : vector<4x128xbf16>, vector<128x128xbf16>, vector<4x128xf32> -> vector<4x128xf32>
    %23 = vector.broadcast %20 : vector<4x1xf32> to vector<4x128xf32>
    %24 = arith.addf %22, %23 : vector<4x128xf32>
    %25 = vector.extract_strided_slice %22 {offsets = [0, 127], sizes = [4, 1], strides = [1, 1]} : vector<4x128xf32> to vector<4x1xf32>
    %26 = arith.addf %20, %25 : vector<4x1xf32>
    %27 = vector.extract_strided_slice %3 {offsets = [0, 384], sizes = [4, 128], strides = [1, 1]} : vector<4x512xbf16> to vector<4x128xbf16>
    %cst_12 = arith.constant dense<0.000000e+00> : vector<4x128xf32>
    %28 = tpu.matmul %27, %7, %cst_12 {dimension_numbers = #tpu.dot_dimension_numbers<[1], [0], [0], [1], [0, 0, 1, 1], [], []>} : vector<4x128xbf16>, vector<128x128xbf16>, vector<4x128xf32> -> vector<4x128xf32>
    %29 = vector.broadcast %26 : vector<4x1xf32> to vector<4x128xf32>
    %30 = arith.addf %28, %29 : vector<4x128xf32>
    %31 = vector.extract_strided_slice %28 {offsets = [0, 127], sizes = [4, 1], strides = [1, 1]} : vector<4x128xf32> to vector<4x1xf32>
    %32 = arith.addf %26, %31 : vector<4x1xf32>
    %33 = tpu.concatenate %12, %18, %24, %30 in 1 : vector<4x128xf32>, vector<4x128xf32>, vector<4x128xf32>, vector<4x128xf32> -> vector<4x512xf32>
    %34 = tpu.iota {dimensions = array<i32: 1>} : vector<4x512xi32>
    %c512_i32 = arith.constant 512 : i32
    %35 = arith.muli %arg1, %c512_i32 : i32
    %36 = vector.broadcast %35 : i32 to vector<4x512xi32>
    %37 = arith.addi %36, %34 : vector<4x512xi32>
    %c1_i32 = arith.constant 1 : i32
    %38 = vector.broadcast %c1_i32 : i32 to vector<4x512xi32>
    %39 = arith.addi %37, %38 : vector<4x512xi32>
    %40 = arith.sitofp %39 : vector<4x512xi32> to vector<4x512xf32>
    %41 = arith.subf %40, %33 : vector<4x512xf32>
    %42 = vector.broadcast %6 : vector<4x1xf32> to vector<4x512xf32>
    %43 = arith.addf %42, %41 : vector<4x512xf32>
    %44 = vector.broadcast %6 : vector<4x1xf32> to vector<4x512xf32>
    %45 = arith.subf %44, %33 : vector<4x512xf32>
    %46 = tpu.reciprocal %43 {approx = true} : vector<4x512xf32> -> vector<4x512xf32>
    %47 = arith.mulf %45, %46 : vector<4x512xf32>
    %cst_13 = arith.constant 1.000000e+00 : f32
    %48 = vector.broadcast %cst_13 : f32 to vector<4x512xf32>
    %49 = arith.subf %48, %47 : vector<4x512xf32>
    %c1_i32_14 = arith.constant 1 : i32
    %50 = tpu.dynamic_rotate %49 by %c1_i32_14 dim 1 : vector<4x512xf32>, i32 -> vector<4x512xf32>
    %c0_i32_15 = arith.constant 0 : i32
    %51 = vector.broadcast %c0_i32_15 : i32 to vector<4x512xi32>
    %52 = arith.cmpi eq, %34, %51 : vector<4x512xi32>
    %c0_16 = arith.constant 0 : index
    %c0_17 = arith.constant 0 : index
    %53 = vector.load %arg8[%c0_16, %c0_17] : memref<4x1xf32, #tpu.memory_space<vmem>>, vector<4x1xf32>
    %54 = vector.shape_cast %53 : vector<4x1xf32> to vector<4x1xf32>
    %55 = vector.broadcast %54 : vector<4x1xf32> to vector<4x512xf32>
    %56 = arith.select %52, %55, %50 : vector<4x512xi1>, vector<4x512xf32>
    %c0_18 = arith.constant 0 : index
    %c0_19 = arith.constant 0 : index
    %57 = vector.load %arg9[%c0_18, %c0_19] : memref<4x512xf32, #tpu.memory_space<vmem>>, vector<4x512xf32>
    %58 = arith.subf %56, %49 : vector<4x512xf32>
    %59 = arith.mulf %5, %58 : vector<4x512xf32>
    %60 = arith.addf %57, %59 : vector<4x512xf32>
    %c0_20 = arith.constant 0 : index
    %c0_21 = arith.constant 0 : index
    %61 = vector.load %arg9[%c0_20, %c0_21] : memref<4x512xf32, #tpu.memory_space<vmem>>, vector<4x512xf32>
    tpu.vector_store %arg9[%c0_20, %c0_21], %60 {strides = array<i32>} : memref<4x512xf32, #tpu.memory_space<vmem>>, vector<4x512xf32>,
    %c0_22 = arith.constant 0 : index
    %c0_23 = arith.constant 0 : index
    %62 = vector.load %arg7[%c0_22, %c0_23] : memref<4x1xf32, #tpu.memory_space<vmem>>, vector<4x1xf32>
    tpu.vector_store %arg7[%c0_22, %c0_23], %32 {strides = array<i32>} : memref<4x1xf32, #tpu.memory_space<vmem>>, vector<4x1xf32>,
    %63 = vector.extract_strided_slice %49 {offsets = [0, 511], sizes = [4, 1], strides = [1, 1]} : vector<4x512xf32> to vector<4x1xf32>
    %c0_24 = arith.constant 0 : index
    %c0_25 = arith.constant 0 : index
    %64 = vector.load %arg8[%c0_24, %c0_25] : memref<4x1xf32, #tpu.memory_space<vmem>>, vector<4x1xf32>
    tpu.vector_store %arg8[%c0_24, %c0_25], %63 {strides = array<i32>} : memref<4x1xf32, #tpu.memory_space<vmem>>, vector<4x1xf32>,
    %c0_i32_26 = arith.constant 0 : i32
    %65 = arith.cmpi eq, %arg1, %c0_i32_26 : i32
    %66 = arith.extui %65 : i1 to i32
    %c0_i32_27 = arith.constant 0 : i32
    %67 = arith.cmpi ne, %66, %c0_i32_27 : i32
    scf.if %67 {
      %c0_28 = arith.constant 0 : index
      %c0_29 = arith.constant 0 : index
      %68 = vector.load %arg9[%c0_28, %c0_29] : memref<4x512xf32, #tpu.memory_space<vmem>>, vector<4x512xf32>
      %cst_30 = arith.constant dense<0.000000e+00> : vector<4xf32>
      %69 = vector.multi_reduction <add>, %68, %cst_30 [1] : vector<4x512xf32> to vector<4xf32>
      %70 = vector.shape_cast %69 : vector<4xf32> to vector<4x1xf32>
      %c0_31 = arith.constant 0 : index
      %c0_32 = arith.constant 0 : index
      %71 = vector.load %arg5[%c0_31, %c0_32] : memref<4x1xf32, #tpu.memory_space<vmem>>, vector<4x1xf32>
      tpu.vector_store %arg5[%c0_31, %c0_32], %70 {strides = array<i32>} : memref<4x1xf32, #tpu.memory_space<vmem>>, vector<4x1xf32>,
    } else {
    }
    return
  }
  func.func @transform_0(%arg0: i32, %arg1: i32) -> (i32, i32) {
    %c0_i32 = arith.constant 0 : i32
    %c0_i32_0 = arith.constant 0 : i32
    return %arg0, %c0_i32 : i32, i32
  }
  func.func @transform_1(%arg0: i32, %arg1: i32) -> (i32, i32) {
    %c0_i32 = arith.constant 0 : i32
    return %arg0, %arg1 : i32, i32
  }
  func.func @transform_2(%arg0: i32, %arg1: i32) -> (i32, i32) {
    %c0_i32 = arith.constant 0 : i32
    return %arg0, %arg1 : i32, i32
  }
  func.func @transform_3(%arg0: i32, %arg1: i32) -> (i32, i32) {
    %c0_i32 = arith.constant 0 : i32
    %c0_i32_0 = arith.constant 0 : i32
    return %arg0, %c0_i32 : i32, i32
  }
}

</mosaic_0001>

<llo_original>
// kernel: eq.12
$region0: #{eq.12}
  %s0 = inlined_call_operand.vmem [shape: s32[2,16,16], index: 0, kind: input, shape index: {}]
  %s1 = inlined_call_operand.vmem [shape: s32[512], index: 1, kind: output, shape index: {}]
  $region1: #{eq.12} parent=0
    #allocation0 [shape = 'u8[4096]{0}', space=vmem, size = 0x1000, scoped, tag = 'scoped mem for output reshape']
    %v2 = vld [vmem:[%s0] ss:$8 sm:$0xf]
    %vm3 = vcmask 130048
    %4 = vst.msk [vmem:[#allocation0] sm:$0xf] %vm3, %v2
    %s5 = scalar_lea.vmem %s0, 7
    %v6 = vld [vmem:[%s5] ss:$8 sm:$0xf]
    %7 = vrot.lane.b32.xlu0 %v6, 112
    %v8 = vpop.permute.xlu0 %7
    %vm9 = vcmask 1048448
    %10 = vst.msk [vmem:[#allocation0] sm:$0xf] %vm9, %v8
    %s11 = scalar_lea.vmem %s0, 6
    %v12 = vld [vmem:[%s11] ss:$8 sm:$0xf]
    %13 = vrot.lane.b32.xlu0 %v12, 96
    %v14 = vpop.permute.xlu0 %13
    %vm15 = vcmask 917248
    %16 = vst.msk [vmem:[#allocation0] sm:$0xf] %vm15, %v14
    %s17 = scalar_lea.vmem %s0, 5
    %v18 = vld [vmem:[%s17] ss:$8 sm:$0xf]
    %19 = vrot.lane.b32.xlu0 %v18, 80
    %v20 = vpop.permute.xlu0 %19
    %vm21 = vcmask 786048
    %22 = vst.msk [vmem:[#allocation0] sm:$0xf] %vm21, %v20
    %s23 = scalar_lea.vmem %s0, 4
    %v24 = vld [vmem:[%s23] ss:$8 sm:$0xf]
    %25 = vrot.lane.b32.xlu0 %v24, 64
    %v26 = vpop.permute.xlu0 %25
    %vm27 = vcmask 654848
    %28 = vst.msk [vmem:[#allocation0] sm:$0xf] %vm27, %v26
    %s29 = scalar_lea.vmem %s0, 3
    %v30 = vld [vmem:[%s29] ss:$8 sm:$0xf]
    %31 = vrot.lane.b32.xlu0 %v30, 48
    %v32 = vpop.permute.xlu0 %31
    %vm33 = vcmask 523648
    %34 = vst.msk [vmem:[#allocation0] sm:$0xf] %vm33, %v32
    %s35 = scalar_lea.vmem %s0, 2
    %v36 = vld [vmem:[%s35] ss:$8 sm:$0xf]
    %37 = vrot.lane.b32.xlu0 %v36, 32
    %v38 = vpop.permute.xlu0 %37
    %vm39 = vcmask 392448
    %40 = vst.msk [vmem:[#allocation0] sm:$0xf] %vm39, %v38
    %s41 = scalar_lea.vmem %s0, 1
    %v42 = vld [vmem:[%s41] ss:$8 sm:$0xf]
    %43 = vrot.lane.b32.xlu0 %v42, 16
    %v44 = vpop.permute.xlu0 %43
    %vm45 = vcmask 261248
    %46 = vst.msk [vmem:[#allocation0] sm:$0xf] %vm45, %v44
    %s48 = sshll.u32 1, 4
    %s49 = ssub.s32 %s48, 1
    %v51 = vld [vmem:[#allocation0] sm:%s49]
    %s52 = sshll.u32 1, 4
    %s53 = ssub.s32 %s52, 1
    %54 = vst [vmem:[%s1] sm:%s53] %v51

// kernel: combined_dice_lovasz_ce_loss.2
$region0: #{combined_dice_lovasz_ce_loss.2}
  #allocation0 [shape = 'u32[]', space=smem, size = 0x4, offset = 0x4, fixed_abs, tag = 'smem constant byte address 0x4 - core index']
  #allocation1 [shape = 'u32[144,128]{1,0:T(1,128)}', space=vmem, size = 0x12000, scoped, tag = 'internal scratch']
  #allocation2 [shape = 'f32[4,256]{1,0:T(4,128)}', space=vmem, size = 0x1000, scoped, tag = 'scratch operand']
  #allocation3 [shape = 'f32[4,256]{1,0:T(4,128)}', space=vmem, size = 0x1000, scoped, tag = 'scratch operand']
  #allocation4 [shape = 'f32[1,256]{1,0:T(1,128)}', space=vmem, size = 0x400, scoped, tag = 'scratch operand']
  #allocation5 [shape = 'f32[4,1]{1,0:T(4,128)}', space=vmem, size = 0x800, scoped, tag = 'scratch operand']
  %s0 = inlined_call_operand.vmem [shape: f32[2,4,256], index: 0, kind: input, shape index: {}]
  %s1 = inlined_call_operand.vmem [shape: s32[2,1,256], index: 1, kind: input, shape index: {}]
  %s2 = inlined_call_operand.vmem [shape: bf16[4,512], index: 2, kind: output, shape index: {0}]
  %s3 = inlined_call_operand.vmem [shape: f32[2,4,1], index: 3, kind: output, shape index: {1}]
  %s4 = inlined_call_operand.vmem [shape: f32[2,4,1], index: 4, kind: output, shape index: {2}]
  %s5 = inlined_call_operand.vmem [shape: f32[2,4,1], index: 5, kind: output, shape index: {3}]
  %s6 = inlined_call_operand.vmem [shape: f32[2,1,1], index: 6, kind: output, shape index: {4}]
  %7 = xla_tuple %s2, %s3, %s4, %s5, %s6
  %s8 = sld [smem:[#allocation0]]
  $region81: #{combined_dice_lovasz_ce_loss.2} parent=0
    _
  %s10 = ssub.s32 1, %s8
  %s11 = scalar_select 0, %s10, %s8
  loop: start=0, step=1, limit=4
  $region2: #{combined_dice_lovasz_ce_loss.2} parent=0 // loop_pre_header
    _
  $region3: #{combined_dice_lovasz_ce_loss.2} parent=0 // loop_header
    %s13 = sphi 0, %s17
    %p14 = scmp.ge.s32.totalorder %s13, 4
    %s20 = sphi 0, %s32
    %s21 = sphi 0, %s28
    %s22 = sphi 0, %s20
    %s23 = sphi 0, %s21
    %s24 = sphi 0, %s22
    %s25 = sphi 0, %s23
    %s37 = sphi 0, %s39
    %s40 = sphi 0, %s37
    %s41 = sphi 0, %s40
    %s57 = sphi 0, %s41
    %s65 = sphi 0, %s67
    %s68 = sphi 0, %s65
    %s69 = sphi 0, %s68
    %s85 = sphi 0, %s69
    %s93 = sphi 0, %s95
    %s96 = sphi 0, %s93
    %s97 = sphi 0, %s96
    %s113 = sphi 0, %s97
    %s119 = sphi 0, %s121
    %s122 = sphi 0, %s119
    %s123 = sphi 0, %s122
    %s139 = sphi 0, %s123
    %s145 = sphi 0, %s147
    %s148 = sphi 0, %s145
    %s149 = sphi 0, %s148
    %s165 = sphi 0, %s149
    %s171 = sphi 0, %s173
    %s174 = sphi 0, %s171
    %s175 = sphi 0, %s174
    %s191 = sphi 0, %s175
    %s197 = sphi 0, %s199
    %s200 = sphi 0, %s197
    %s201 = sphi 0, %s200
    %s217 = sphi 0, %s201
  $region4: #{combined_dice_lovasz_ce_loss.2} parent=0 // loop_header_branch
    %16 = sbr.rel (%p14) target = $region8
  $region5: #{combined_dice_lovasz_ce_loss.2} parent=0 // loop_body
    %s18 = ssub.s32 %s13, 1
    %s19 = ssub.s32 %s13, 2
    %s26 = sadd.s32 1, %s21
    %p27 = scmp.ge.s32.totalorder %s26, 1
    %s28 = scalar_select %p27, 0, %s26
    %s29 = sadd.s32 1, %s20
    %s30 = scalar_select %p27, %s29, %s20
    %p31 = scmp.ge.s32.totalorder %s30, 2
    %s32 = scalar_select %p31, 0, %s30
    %s33 = ssub.s32 %s20, %s32
    %s34 = ssub.s32 %s21, %s28
    %s35 = sor.u32 %s33, %s34
    %p36 = scmp.eq.s32.totalorder %s35, 0
    %s38 = sadd.s32 %s37, 1
    %s39 = scalar_select %p36, %s37, %s38
    %p42 = pneg %p36
    %p43 = scmp.eq.s32.totalorder %s13, 1
    %p44 = por %p42, %p43
    %p45 = scmp.ne.s32.totalorder %s37, %s40
    %p46 = scmp.eq.s32.totalorder %s13, 0
    %p47 = por %p45, %p46
    %p48 = scmp.ne.s32.totalorder %s37, %s40
    %p49 = scmp.eq.s32.totalorder %s18, 1
    %p50 = por %p48, %p49
    %p51 = scmp.ne.s32.totalorder %s40, %s41
    %p52 = scmp.eq.s32.totalorder %s18, 0
    %p53 = por %p51, %p52
    %p54 = scmp.ne.s32.totalorder %s40, %s41
    %p55 = scmp.eq.s32.totalorder %s19, 1
    %p56 = por %p54, %p55
    %p58 = scmp.ne.s32.totalorder %s41, %s57
    %p59 = scmp.eq.s32.totalorder %s19, 0
    %p60 = por %p58, %p59
    %s61 = ssub.s32 %s20, %s32
    %s62 = ssub.s32 %s21, %s28
    %s63 = sor.u32 %s61, %s62
    %p64 = scmp.eq.s32.totalorder %s63, 0
    %s66 = sadd.s32 %s65, 1
    %s67 = scalar_select %p64, %s65, %s66
    %p70 = pneg %p64
    %p71 = scmp.eq.s32.totalorder %s13, 1
    %p72 = por %p70, %p71
    %p73 = scmp.ne.s32.totalorder %s65, %s68
    %p74 = scmp.eq.s32.totalorder %s13, 0
    %p75 = por %p73, %p74
    %p76 = scmp.ne.s32.totalorder %s65, %s68
    %p77 = scmp.eq.s32.totalorder %s18, 1
    %p78 = por %p76, %p77
    %p79 = scmp.ne.s32.totalorder %s68, %s69
    %p80 = scmp.eq.s32.totalorder %s18, 0
    %p81 = por %p79, %p80
    %p82 = scmp.ne.s32.totalorder %s68, %s69
    %p83 = scmp.eq.s32.totalorder %s19, 1
    %p84 = por %p82, %p83
    %p86 = scmp.ne.s32.totalorder %s69, %s85
    %p87 = scmp.eq.s32.totalorder %s19, 0
    %p88 = por %p86, %p87
    %s89 = sadd.s32 %s20, %s21
    %s90 = sadd.s32 %s32, %s28
    %s91 = ssub.s32 %s89, %s90
    %p92 = scmp.eq.s32.totalorder %s91, 0
    %s94 = sadd.s32 %s93, 1
    %s95 = scalar_select %p92, %s93, %s94
    %p98 = pneg %p92
    %p99 = scmp.eq.s32.totalorder %s13, 1
    %p100 = por %p98, %p99
    %p101 = scmp.ne.s32.totalorder %s93, %s96
    %p102 = scmp.eq.s32.totalorder %s13, 0
    %p103 = por %p101, %p102
    %p104 = scmp.ne.s32.totalorder %s93, %s96
    %p105 = scmp.eq.s32.totalorder %s18, 1
    %p106 = por %p104, %p105
    %p107 = scmp.ne.s32.totalorder %s96, %s97
    %p108 = scmp.eq.s32.totalorder %s18, 0
    %p109 = por %p107, %p108
    %p110 = scmp.ne.s32.totalorder %s96, %s97
    %p111 = scmp.eq.s32.totalorder %s19, 1
    %p112 = por %p110, %p111
    %p114 = scmp.ne.s32.totalorder %s97, %s113
    %p115 = scmp.eq.s32.totalorder %s19, 0
    %p116 = por %p114, %p115
    %s117 = ssub.s32 %s20, %s32
    %p118 = scmp.eq.s32.totalorder %s117, 0
    %s120 = sadd.s32 %s119, 1
    %s121 = scalar_select %p118, %s119, %s120
    %p124 = pneg %p118
    %p125 = scmp.eq.s32.totalorder %s13, 1
    %p126 = por %p124, %p125
    %p127 = scmp.ne.s32.totalorder %s119, %s122
    %p128 = scmp.eq.s32.totalorder %s13, 0
    %p129 = por %p127, %p128
    %p130 = scmp.ne.s32.totalorder %s119, %s122
    %p131 = scmp.eq.s32.totalorder %s18, 1
    %p132 = por %p130, %p131
    %p133 = scmp.ne.s32.totalorder %s122, %s123
    %p134 = scmp.eq.s32.totalorder %s18, 0
    %p135 = por %p133, %p134
    %p136 = scmp.ne.s32.totalorder %s122, %s123
    %p137 = scmp.eq.s32.totalorder %s19, 1
    %p138 = por %p136, %p137
    %p140 = scmp.ne.s32.totalorder %s123, %s139
    %p141 = scmp.eq.s32.totalorder %s19, 0
    %p142 = por %p140, %p141
    %s143 = ssub.s32 %s20, %s32
    %p144 = scmp.eq.s32.totalorder %s143, 0
    %s146 = sadd.s32 %s145, 1
    %s147 = scalar_select %p144, %s145, %s146
    %p150 = pneg %p144
    %p151 = scmp.eq.s32.totalorder %s13, 1
    %p152 = por %p150, %p151
    %p153 = scmp.ne.s32.totalorder %s145, %s148
    %p154 = scmp.eq.s32.totalorder %s13, 0
    %p155 = por %p153, %p154
    %p156 = scmp.ne.s32.totalorder %s145, %s148
    %p157 = scmp.eq.s32.totalorder %s18, 1
    %p158 = por %p156, %p157
    %p159 = scmp.ne.s32.totalorder %s148, %s149
    %p160 = scmp.eq.s32.totalorder %s18, 0
    %p161 = por %p159, %p160
    %p162 = scmp.ne.s32.totalorder %s148, %s149
    %p163 = scmp.eq.s32.totalorder %s19, 1
    %p164 = por %p162, %p163
    %p166 = scmp.ne.s32.totalorder %s149, %s165
    %p167 = scmp.eq.s32.totalorder %s19, 0
    %p168 = por %p166, %p167
    %s169 = ssub.s32 %s20, %s32
    %p170 = scmp.eq.s32.totalorder %s169, 0
    %s172 = sadd.s32 %s171, 1
    %s173 = scalar_select %p170, %s171, %s172
    %p176 = pneg %p170
    %p177 = scmp.eq.s32.totalorder %s13, 1
    %p178 = por %p176, %p177
    %p179 = scmp.ne.s32.totalorder %s171, %s174
    %p180 = scmp.eq.s32.totalorder %s13, 0
    %p181 = por %p179, %p180
    %p182 = scmp.ne.s32.totalorder %s171, %s174
    %p183 = scmp.eq.s32.totalorder %s18, 1
    %p184 = por %p182, %p183
    %p185 = scmp.ne.s32.totalorder %s174, %s175
    %p186 = scmp.eq.s32.totalorder %s18, 0
    %p187 = por %p185, %p186
    %p188 = scmp.ne.s32.totalorder %s174, %s175
    %p189 = scmp.eq.s32.totalorder %s19, 1
    %p190 = por %p188, %p189
    %p192 = scmp.ne.s32.totalorder %s175, %s191
    %p193 = scmp.eq.s32.totalorder %s19, 0
    %p194 = por %p192, %p193
    %s195 = ssub.s32 %s20, %s32
    %p196 = scmp.eq.s32.totalorder %s195, 0
    %s198 = sadd.s32 %s197, 1
    %s199 = scalar_select %p196, %s197, %s198
    %p202 = pneg %p196
    %p203 = scmp.eq.s32.totalorder %s13, 1
    %p204 = por %p202, %p203
    %p205 = scmp.ne.s32.totalorder %s197, %s200
    %p206 = scmp.eq.s32.totalorder %s13, 0
    %p207 = por %p205, %p206
    %p208 = scmp.ne.s32.totalorder %s197, %s200
    %p209 = scmp.eq.s32.totalorder %s18, 1
    %p210 = por %p208, %p209
    %p211 = scmp.ne.s32.totalorder %s200, %s201
    %p212 = scmp.eq.s32.totalorder %s18, 0
    %p213 = por %p211, %p212
    %p214 = scmp.ne.s32.totalorder %s200, %s201
    %p215 = scmp.eq.s32.totalorder %s19, 1
    %p216 = por %p214, %p215
    %p218 = scmp.ne.s32.totalorder %s201, %s217
    %p219 = scmp.eq.s32.totalorder %s19, 0
    %p220 = por %p218, %p219
    %p221 = scmp.le.s32.totalorder 1, %s13
    %p222 = scmp.lt.s32.totalorder %s13, 3
    %p223 = pnand %p221, %p222
    %p224 = pneg %p223
    // Predicated region
    $region9: #{combined_dice_lovasz_ce_loss.2} parent=5 // pred_check
      _
    $region10: #{combined_dice_lovasz_ce_loss.2} parent=5 // pred_check_branch
      %226 = sbr.rel (%p223) target = $region12
    $region11: #{combined_dice_lovasz_ce_loss.2} parent=5 // pred_region
      %s227 = ssub.s32 %s13, 1
    $region12: #{combined_dice_lovasz_ce_loss.2} parent=5 // pred_fallthru
      _
    %p228 = scmp.lt.s32.totalorder %s13, 2
    // Predicated region
    $region13: #{combined_dice_lovasz_ce_loss.2} parent=5 // pred_check
      %p229 = pneg %p228
    $region14: #{combined_dice_lovasz_ce_loss.2} parent=5 // pred_check_branch
      %231 = sbr.rel (%p229) target = $region16
    $region15: #{combined_dice_lovasz_ce_loss.2} parent=5 // pred_region
      // Predicated region
      $region17: #{combined_dice_lovasz_ce_loss.2} parent=15 // pred_check
        %p232 = pneg %p47
      $region18: #{combined_dice_lovasz_ce_loss.2} parent=15 // pred_check_branch
        %234 = sbr.rel (%p232) target = $region20
      $region19: #{combined_dice_lovasz_ce_loss.2} parent=15 // pred_region
        %s235 = smul.u32 2, %s21
        %p236 = scmp.lt.s32.totalorder %s20, 1
        %s237 = scalar_select %p236, %s20, 1
        %p238 = scmp.lt.s32.totalorder %s235, 1
        %s239 = scalar_select %p238, %s235, 1
        %s240 = smul.addr %s237, 2
        %s241 = sadd.s32 %s239, %s240
        %s242 = smul.addr %s241, 4
        %s243 = scalar_lea.vmem %s0, %s242
        %s244 = smul.u32 2, %s21
      $region20: #{combined_dice_lovasz_ce_loss.2} parent=15 // pred_fallthru
        _
      // Predicated region
      $region21: #{combined_dice_lovasz_ce_loss.2} parent=15 // pred_check
        %p245 = pneg %p75
      $region22: #{combined_dice_lovasz_ce_loss.2} parent=15 // pred_check_branch
        %247 = sbr.rel (%p245) target = $region24
      $region23: #{combined_dice_lovasz_ce_loss.2} parent=15 // pred_region
        %s248 = smul.u32 2, %s21
        %p249 = scmp.lt.s32.totalorder %s20, 1
        %s250 = scalar_select %p249, %s20, 1
        %p251 = scmp.lt.s32.totalorder %s248, 1
        %s252 = scalar_select %p251, %s248, 1
        %s253 = smul.addr %s250, 2
        %s254 = sadd.s32 %s252, %s253
        %s255 = scalar_lea.vmem %s1, %s254
        %s256 = smul.u32 2, %s21
      $region24: #{combined_dice_lovasz_ce_loss.2} parent=15 // pred_fallthru
        _
    $region16: #{combined_dice_lovasz_ce_loss.2} parent=5 // pred_fallthru
      _
    %p257 = scmp.le.s32.totalorder 1, %s13
    %p258 = scmp.lt.s32.totalorder %s13, 3
    %p259 = pnand %p257, %p258
    %p260 = pneg %p259
    // Predicated region
    $region25: #{combined_dice_lovasz_ce_loss.2} parent=5 // pred_check
      _
    $region26: #{combined_dice_lovasz_ce_loss.2} parent=5 // pred_check_branch
      %262 = sbr.rel (%p259) target = $region28
    $region27: #{combined_dice_lovasz_ce_loss.2} parent=5 // pred_region
      %s263 = ssub.s32 %s13, 1
      %s264 = smul.u32 2, %s23
      %p265 = scmp.lt.s32.totalorder %s22, 1
      %s266 = scalar_select %p265, %s22, 1
      %p267 = scmp.lt.s32.totalorder %s264, 1
      %s268 = scalar_select %p267, %s264, 1
      %s269 = smul.addr %s266, 2
      %s270 = sadd.s32 %s268, %s269
      %s271 = smul.addr %s270, 4
      %s272 = scalar_lea.vmem %s0, %s271
      %p273 = pneg %p53
      %p274 = pneg %p50
      %s275 = smul.u32 2, %s23
      %p276 = scmp.lt.s32.totalorder %s22, 1
      %s277 = scalar_select %p276, %s22, 1
      %p278 = scmp.lt.s32.totalorder %s275, 1
      %s279 = scalar_select %p278, %s275, 1
      %s280 = smul.addr %s277, 2
      %s281 = sadd.s32 %s279, %s280
      %s282 = scalar_lea.vmem %s1, %s281
      %p283 = pneg %p81
      %p284 = pneg %p78
      %p285 = pneg %p109
      %p286 = pneg %p106
      %s287 = sadd.s32 %s22, %s23
      %s288 = smul.u32 2, %s287
      %p289 = scmp.lt.s32.totalorder %s288, 3
      %s290 = scalar_select %p289, %s288, 3
      %s291 = smul.addr %s290, 2
      %s292 = scalar_lea.vmem %s2, %s291
      %p293 = pneg %p135
      %p294 = pneg %p132
      %p295 = scmp.lt.s32.totalorder %s22, 1
      %s296 = scalar_select %p295, %s22, 1
      %s297 = smul.addr %s296, 4
      %s298 = scalar_lea.vmem %s3, %s297
      %p299 = pneg %p161
      %p300 = pneg %p158
      %p301 = scmp.lt.s32.totalorder %s22, 1
      %s302 = scalar_select %p301, %s22, 1
      %s303 = smul.addr %s302, 4
      %s304 = scalar_lea.vmem %s4, %s303
      %p305 = pneg %p187
      %p306 = pneg %p184
      %p307 = scmp.lt.s32.totalorder %s22, 1
      %s308 = scalar_select %p307, %s22, 1
      %s309 = smul.addr %s308, 4
      %s310 = scalar_lea.vmem %s5, %s309
      %p311 = pneg %p213
      %p312 = pneg %p210
      %p313 = scmp.lt.s32.totalorder %s22, 1
      %s314 = scalar_select %p313, %s22, 1
      %s315 = scalar_lea.vmem %s6, %s314
      %s316 = smul.u32 2, %s23
      %p317 = scmp.lt.s32.totalorder %s22, 1
      %s318 = scalar_select %p317, %s22, 1
      %p319 = scmp.lt.s32.totalorder %s316, 1
      %s320 = scalar_select %p319, %s316, 1
      %s321 = smul.addr %s318, 2
      %s322 = sadd.s32 %s320, %s321
      %s323 = smul.addr %s322, 4
      %s324 = scalar_lea.vmem %s0, %s323
      %s325 = smul.u32 2, %s23
      %s326 = smul.u32 2, %s23
      %p327 = scmp.lt.s32.totalorder %s22, 1
      %s328 = scalar_select %p327, %s22, 1
      %p329 = scmp.lt.s32.totalorder %s326, 1
      %s330 = scalar_select %p329, %s326, 1
      %s331 = smul.addr %s328, 2
      %s332 = sadd.s32 %s330, %s331
      %s333 = scalar_lea.vmem %s1, %s332
      %s334 = smul.u32 2, %s23
      %s335 = sadd.s32 %s22, %s23
      %s336 = smul.u32 2, %s335
      %p337 = scmp.lt.s32.totalorder %s336, 3
      %s338 = scalar_select %p337, %s336, 3
      %s339 = smul.addr %s338, 2
      %s340 = scalar_lea.vmem %s2, %s339
      %s341 = sadd.s32 %s22, %s23
      %s342 = smul.u32 2, %s341
      %p343 = scmp.lt.s32.totalorder %s22, 1
      %s344 = scalar_select %p343, %s22, 1
      %s345 = smul.addr %s344, 4
      %s346 = scalar_lea.vmem %s3, %s345
      %p347 = scmp.lt.s32.totalorder %s22, 1
      %s348 = scalar_select %p347, %s22, 1
      %s349 = smul.addr %s348, 4
      %s350 = scalar_lea.vmem %s4, %s349
      %p351 = scmp.lt.s32.totalorder %s22, 1
      %s352 = scalar_select %p351, %s22, 1
      %s353 = smul.addr %s352, 4
      %s354 = scalar_lea.vmem %s5, %s353
      %p355 = scmp.lt.s32.totalorder %s22, 1
      %s356 = scalar_select %p355, %s22, 1
      %s357 = scalar_lea.vmem %s6, %s356
      %p358 = scmp.eq.s32.totalorder %s23, 0
      // Predicated region
      $region29: #{combined_dice_lovasz_ce_loss.2} parent=27 // pred_check
        %p359 = pneg %p358
      $region30: #{combined_dice_lovasz_ce_loss.2} parent=27 // pred_check_branch
        %361 = sbr.rel (%p359) target = $region32
      $region31: #{combined_dice_lovasz_ce_loss.2} parent=27 // pred_region
        %362 = vst [vmem:[#allocation2] sm:$0xff] 0.0
        %363 = vst [vmem:[#allocation3] sm:$0xff] 0.0
        %v364 = vlaneseq
        %vm365 = vcmp.ge.s32.totalorder %v364, 0
        %vm366 = vcmp.lt.s32.totalorder %v364, 256
        %vm367 = vmand %vm365, %vm366
        %368 = vst.msk [vmem:[#allocation4] sm:$0x3] %vm367, 0.0
        %vm369 = vcmask 3072
        %370 = vst.msk [vmem:[#allocation5] sm:$0xf] %vm369, 0.0
      $region32: #{combined_dice_lovasz_ce_loss.2} parent=27 // pred_fallthru
        _
      %v371 = vld [vmem:[%s324] sm:$0xff]
      %v372 = vld [vmem:[%s333] sm:$0x3]
      %v373 = vlaneseq
      %v374 = vshrl.u32 %v373, 7
      %v375 = vlaneseq
      %v376 = vshrl.u32 %v375, 7
      %v377 = vsub.s32 0, %v376
      %v378 = vrot.slane %v372, %v377
      %v379 = vlaneseq
      %v380 = vshrl.u32 %v379, 7
      %v381 = vsub.s32 1, %v380
      %v382 = vrot.slane %v372, %v381
      %vm383 = vcmp.eq.s32.totalorder %v374, %v378
      %vm384 = vcmp.eq.s32.totalorder %v374, %v382
      %v385 = vsel %vm383, 1, 0
      %v386 = vsel %vm384, 1, 0
      %v387 = vcvt.s32.f32 %v385
      %v388 = vcvt.s32.f32 %v386
      %v390 = vcombine.high %v371, %v371
      %vm392 = vcmask 1043456
      %v393 = vsel %vm392, %v371, -inf
      %v394 = vrot.slane %v393, 4
      %v395 = vmax.f32 %v393, %v394
      %v396 = vrot.slane %v395, 2
      %v397 = vmax.f32 %v395, %v396
      %v398 = vrot.slane %v397, 1
      %v399 = vmax.f32 %v397, %v398
      %v400 = vsel %vm392, %v390, -inf
      %v401 = vrot.slane %v400, 4
      %v402 = vmax.f32 %v400, %v401
      %v403 = vrot.slane %v402, 2
      %v404 = vmax.f32 %v402, %v403
      %v405 = vrot.slane %v404, 1
      %v406 = vmax.f32 %v404, %v405
      %v409 = vcombine.low %v399, %v406
      %v411 = vsub.f32 %v371, %v409
      %v412 = vmul.f32 %v411, 1.442695
      %v413 = vpow.pop %v412
      %v415 = vcombine.high %v413, %v413
      %v417 = vsel %vm392, %v413, 0.0
      %v418 = vrot.slane %v417, 4
      %v419 = vadd.f32 %v417, %v418
      %v420 = vrot.slane %v419, 2
      %v421 = vadd.f32 %v419, %v420
      %v422 = vrot.slane %v421, 1
      %v423 = vadd.f32 %v421, %v422
      %v424 = vsel %vm392, %v415, 0.0
      %v425 = vrot.slane %v424, 4
      %v426 = vadd.f32 %v424, %v425
      %v427 = vrot.slane %v426, 2
      %v428 = vadd.f32 %v426, %v427
      %v429 = vrot.slane %v428, 1
      %v430 = vadd.f32 %v428, %v429
      %v431 = vrcp.pop %v423
      %v432 = vrcp.pop %v430
      %v435 = vcombine.low %v431, %v432
      %v437 = vmul.f32 %v413, %v435
      %v439 = vcombine.high %v437, %v437
      %v441 = vsub.f32 %v387, %v437
      %v442 = vsub.f32 %v388, %v439
      %v443 = vand.u32 2147483647, %v441
      %v444 = vand.u32 2147483647, %v442
      %v445 = vsub.f32 0.0, %v443
      %v446 = vsub.f32 0.0, %v444
      %v447 = vpack.c.bf16 %v445, %v445
      %v448 = vpack.c.bf16 %v446, %v446
      %v451 = vcombine.low %v447, %v448
      %v453 = vunpack.c.l.s4 1983009808
      %v454 = vunpack.c.0.s8 %v453
      %v455 = vlaneseq
      %v456 = vshrl.u32 %v455, 7
      %v457 = vsub.s32 %v454, %v456
      %v458 = vrot.slane %v451, %v457
      %460 = vst [vmem:[%s340] sm:$0xf] %v458
      %v461 = vld [vmem:[#allocation2] sm:$0xff]
      %v464 = vcombine.low %v387, %v388
      %v466 = vmul.f32 %v437, %v464
      %v467 = vadd.f32 %v461, %v466
      %468 = vst [vmem:[#allocation2] sm:$0xff] %v467
      %v469 = vld [vmem:[#allocation3] sm:$0xff]
      %v470 = vadd.f32 %v469, %v437
      %471 = vst [vmem:[#allocation3] sm:$0xff] %v470
      %v472 = vld [vmem:[#allocation5] sm:$0xf]
      %v473 = vsel %vm392, %v387, 0.0
      %v474 = vsel %vm392, %v388, 0.0
      %v475 = vadd.f32 %v473, %v474
      %476 = vadd.xlane.f32.xlu0 %v475
      %v477 = vpop.xlane.xlu0 %476
      %v478 = vadd.f32 %v472, %v477
      %vm479 = vcmask 3072
      %480 = vst.msk [vmem:[#allocation5] sm:$0xf] %vm479, %v478
      %v481 = vmul.f32 %v371, %v464
      %v483 = vcombine.high %v481, %v481
      %v485 = vsel %vm392, %v481, 0.0
      %v486 = vrot.slane %v485, 4
      %v487 = vadd.f32 %v485, %v486
      %v488 = vrot.slane %v487, 2
      %v489 = vadd.f32 %v487, %v488
      %v490 = vrot.slane %v489, 1
      %v491 = vadd.f32 %v489, %v490
      %v492 = vsel %vm392, %v483, 0.0
      %v493 = vrot.slane %v492, 4
      %v494 = vadd.f32 %v492, %v493
      %v495 = vrot.slane %v494, 2
      %v496 = vadd.f32 %v494, %v495
      %v497 = vrot.slane %v496, 1
      %v498 = vadd.f32 %v496, %v497
      %v499 = vld [vmem:[#allocation4] sm:$0x3]
      %v500 = vlog2.pop %v423
      %v501 = vmul.f32 %v500, 0.6931472
      %v502 = vlog2.pop %v430
      %v503 = vmul.f32 %v502, 0.6931472
      %v504 = vadd.f32 %v399, %v501
      %v505 = vadd.f32 %v406, %v503
      %v506 = vsub.f32 %v504, %v491
      %v507 = vsub.f32 %v505, %v498
      %v510 = vcombine.low %v506, %v507
      %v512 = vunpack.c.l.s4 1966171168
      %v513 = vunpack.c.0.s8 %v512
      %v514 = vlaneseq
      %v515 = vshrl.u32 %v514, 7
      %v516 = vsub.s32 %v513, %v515
      %v517 = vrot.slane %v510, %v516
      %v519 = vunpack.c.l.s4 1966171168
      %v520 = vunpack.c.0.s8 %v519
      %v521 = vlaneseq
      %v522 = vshrl.u32 %v521, 7
      %v523 = vsub.s32 %v520, %v522
      %v524 = vrot.slane %v517, %v523
      %v526 = vadd.f32 %v499, %v524
      %v527 = vlaneseq
      %vm528 = vcmp.ge.s32.totalorder %v527, 0
      %vm529 = vcmp.lt.s32.totalorder %v527, 256
      %vm530 = vmand %vm528, %vm529
      %531 = vst.msk [vmem:[#allocation4] sm:$0x3] %vm530, %v526
      // Predicated region
      $region33: #{combined_dice_lovasz_ce_loss.2} parent=27 // pred_check
        %p532 = pneg %p358
      $region34: #{combined_dice_lovasz_ce_loss.2} parent=27 // pred_check_branch
        %534 = sbr.rel (%p532) target = $region36
      $region35: #{combined_dice_lovasz_ce_loss.2} parent=27 // pred_region
        %v535 = vld [vmem:[#allocation2] sm:$0xff]
        %v537 = vcombine.high %v535, %v535
        %v539 = vsel %vm392, %v535, 0.0
        %v540 = vsel %vm392, %v537, 0.0
        %v541 = vadd.f32 %v539, %v540
        %542 = vadd.xlane.f32.xlu0 %v541
        %v543 = vpop.xlane.xlu0 %542
        %544 = vst.msk [vmem:[%s346] sm:$0xf] %vm479, %v543
        %v545 = vld [vmem:[#allocation3] sm:$0xff]
        %v547 = vcombine.high %v545, %v545
        %v549 = vsel %vm392, %v545, 0.0
        %v550 = vsel %vm392, %v547, 0.0
        %v551 = vadd.f32 %v549, %v550
        %552 = vadd.xlane.f32.xlu0 %v551
        %v553 = vpop.xlane.xlu0 %552
        %554 = vst.msk [vmem:[%s350] sm:$0xf] %vm479, %v553
        %v555 = vld [vmem:[#allocation5] sm:$0xf]
        %556 = vst.msk [vmem:[%s354] sm:$0xf] %vm479, %v555
        %v557 = vld [vmem:[#allocation4] sm:$0x3]
        %v559 = vlaneseq
        %v560 = vshrl.u32 %v559, 7
        %v561 = vsub.s32 0, %v560
        %v562 = vrot.slane %v557, %v561
        %v563 = vlaneseq
        %v564 = vshrl.u32 %v563, 7
        %v565 = vsub.s32 1, %v564
        %v566 = vrot.slane %v557, %v565
        %vm569 = vcmask 1040384
        %v570 = vsel %vm569, %v562, 0.0
        %v571 = vsel %vm569, %v566, 0.0
        %v572 = vadd.f32 %v570, %v571
        %573 = vadd.xlane.f32.xlu0 %v572
        %v574 = vpop.xlane.xlu0 %573
        %vm575 = vcmask 0
        %576 = vst.msk [vmem:[%s357] sm:$0x1] %vm575, %v574
      $region36: #{combined_dice_lovasz_ce_loss.2} parent=27 // pred_fallthru
        _
      %s577 = sadd.s32 %s22, %s23
      %s578 = smul.u32 2, %s577
      %p579 = scmp.lt.s32.totalorder %s578, 3
      %s580 = scalar_select %p579, %s578, 3
      %s581 = smul.addr %s580, 2
      %s582 = scalar_lea.vmem %s2, %s581
      %p583 = scmp.lt.s32.totalorder %s22, 1
      %s584 = scalar_select %p583, %s22, 1
      %s585 = smul.addr %s584, 4
      %s586 = scalar_lea.vmem %s3, %s585
      %p587 = scmp.lt.s32.totalorder %s22, 1
      %s588 = scalar_select %p587, %s22, 1
      %s589 = smul.addr %s588, 4
      %s590 = scalar_lea.vmem %s4, %s589
      %p591 = scmp.lt.s32.totalorder %s22, 1
      %s592 = scalar_select %p591, %s22, 1
      %s593 = smul.addr %s592, 4
      %s594 = scalar_lea.vmem %s5, %s593
      %p595 = scmp.lt.s32.totalorder %s22, 1
      %s596 = scalar_select %p595, %s22, 1
      %s597 = scalar_lea.vmem %s6, %s596
      // Predicated region
      $region37: #{combined_dice_lovasz_ce_loss.2} parent=27 // pred_check
        %p598 = pneg %p106
      $region38: #{combined_dice_lovasz_ce_loss.2} parent=27 // pred_check_branch
        %600 = sbr.rel (%p598) target = $region40
      $region39: #{combined_dice_lovasz_ce_loss.2} parent=27 // pred_region
        %s601 = sadd.s32 %s22, %s23
        %s602 = smul.u32 2, %s601
      $region40: #{combined_dice_lovasz_ce_loss.2} parent=27 // pred_fallthru
        _
      // Predicated region
      $region41: #{combined_dice_lovasz_ce_loss.2} parent=27 // pred_check
        %p603 = pneg %p132
      $region42: #{combined_dice_lovasz_ce_loss.2} parent=27 // pred_check_branch
        %605 = sbr.rel (%p603) target = $region44
      $region43: #{combined_dice_lovasz_ce_loss.2} parent=27 // pred_region
        _
      $region44: #{combined_dice_lovasz_ce_loss.2} parent=27 // pred_fallthru
        _
      // Predicated region
      $region45: #{combined_dice_lovasz_ce_loss.2} parent=27 // pred_check
        %p606 = pneg %p158
      $region46: #{combined_dice_lovasz_ce_loss.2} parent=27 // pred_check_branch
        %608 = sbr.rel (%p606) target = $region48
      $region47: #{combined_dice_lovasz_ce_loss.2} parent=27 // pred_region
        _
      $region48: #{combined_dice_lovasz_ce_loss.2} parent=27 // pred_fallthru
        _
      // Predicated region
      $region49: #{combined_dice_lovasz_ce_loss.2} parent=27 // pred_check
        %p609 = pneg %p184
      $region50: #{combined_dice_lovasz_ce_loss.2} parent=27 // pred_check_branch
        %611 = sbr.rel (%p609) target = $region52
      $region51: #{combined_dice_lovasz_ce_loss.2} parent=27 // pred_region
        _
      $region52: #{combined_dice_lovasz_ce_loss.2} parent=27 // pred_fallthru
        _
      // Predicated region
      $region53: #{combined_dice_lovasz_ce_loss.2} parent=27 // pred_check
        %p612 = pneg %p210
      $region54: #{combined_dice_lovasz_ce_loss.2} parent=27 // pred_check_branch
        %614 = sbr.rel (%p612) target = $region56
      $region55: #{combined_dice_lovasz_ce_loss.2} parent=27 // pred_region
        _
      $region56: #{combined_dice_lovasz_ce_loss.2} parent=27 // pred_fallthru
        _
    $region28: #{combined_dice_lovasz_ce_loss.2} parent=5 // pred_fallthru
      _
    %p615 = scmp.le.s32.totalorder 2, %s13
    // Predicated region
    $region57: #{combined_dice_lovasz_ce_loss.2} parent=5 // pred_check
      %p616 = pneg %p615
    $region58: #{combined_dice_lovasz_ce_loss.2} parent=5 // pred_check_branch
      %618 = sbr.rel (%p616) target = $region60
    $region59: #{combined_dice_lovasz_ce_loss.2} parent=5 // pred_region
      %s619 = ssub.s32 %s13, 2
      // Predicated region
      $region61: #{combined_dice_lovasz_ce_loss.2} parent=59 // pred_check
        %p620 = pneg %p112
      $region62: #{combined_dice_lovasz_ce_loss.2} parent=59 // pred_check_branch
        %622 = sbr.rel (%p620) target = $region64
      $region63: #{combined_dice_lovasz_ce_loss.2} parent=59 // pred_region
        %s623 = sadd.s32 %s24, %s25
        %s624 = smul.u32 2, %s623
        %p625 = scmp.lt.s32.totalorder %s624, 3
        %s626 = scalar_select %p625, %s624, 3
        %s627 = smul.addr %s626, 2
        %s628 = scalar_lea.vmem %s2, %s627
      $region64: #{combined_dice_lovasz_ce_loss.2} parent=59 // pred_fallthru
        _
      // Predicated region
      $region65: #{combined_dice_lovasz_ce_loss.2} parent=59 // pred_check
        %p629 = pneg %p138
      $region66: #{combined_dice_lovasz_ce_loss.2} parent=59 // pred_check_branch
        %631 = sbr.rel (%p629) target = $region68
      $region67: #{combined_dice_lovasz_ce_loss.2} parent=59 // pred_region
        %p632 = scmp.lt.s32.totalorder %s24, 1
        %s633 = scalar_select %p632, %s24, 1
        %s634 = smul.addr %s633, 4
        %s635 = scalar_lea.vmem %s3, %s634
      $region68: #{combined_dice_lovasz_ce_loss.2} parent=59 // pred_fallthru
        _
      // Predicated region
      $region69: #{combined_dice_lovasz_ce_loss.2} parent=59 // pred_check
        %p636 = pneg %p164
      $region70: #{combined_dice_lovasz_ce_loss.2} parent=59 // pred_check_branch
        %638 = sbr.rel (%p636) target = $region72
      $region71: #{combined_dice_lovasz_ce_loss.2} parent=59 // pred_region
        %p639 = scmp.lt.s32.totalorder %s24, 1
        %s640 = scalar_select %p639, %s24, 1
        %s641 = smul.addr %s640, 4
        %s642 = scalar_lea.vmem %s4, %s641
      $region72: #{combined_dice_lovasz_ce_loss.2} parent=59 // pred_fallthru
        _
      // Predicated region
      $region73: #{combined_dice_lovasz_ce_loss.2} parent=59 // pred_check
        %p643 = pneg %p190
      $region74: #{combined_dice_lovasz_ce_loss.2} parent=59 // pred_check_branch
        %645 = sbr.rel (%p643) target = $region76
      $region75: #{combined_dice_lovasz_ce_loss.2} parent=59 // pred_region
        %p646 = scmp.lt.s32.totalorder %s24, 1
        %s647 = scalar_select %p646, %s24, 1
        %s648 = smul.addr %s647, 4
        %s649 = scalar_lea.vmem %s5, %s648
      $region76: #{combined_dice_lovasz_ce_loss.2} parent=59 // pred_fallthru
        _
      // Predicated region
      $region77: #{combined_dice_lovasz_ce_loss.2} parent=59 // pred_check
        %p650 = pneg %p216
      $region78: #{combined_dice_lovasz_ce_loss.2} parent=59 // pred_check_branch
        %652 = sbr.rel (%p650) target = $region80
      $region79: #{combined_dice_lovasz_ce_loss.2} parent=59 // pred_region
        %p653 = scmp.lt.s32.totalorder %s24, 1
        %s654 = scalar_select %p653, %s24, 1
        %s655 = scalar_lea.vmem %s6, %s654
      $region80: #{combined_dice_lovasz_ce_loss.2} parent=59 // pred_fallthru
        _
    $region60: #{combined_dice_lovasz_ce_loss.2} parent=5 // pred_fallthru
      _
  $region6: #{combined_dice_lovasz_ce_loss.2} parent=0 // loop_footer
    %s17 = sadd.s32 1, %s13
  $region7: #{combined_dice_lovasz_ce_loss.2} parent=0 // loop_footer_branch
    %12 = sbr.rel target = $region3
  $region8: #{combined_dice_lovasz_ce_loss.2} parent=0 // loop_exit
    _

// kernel: combined_dice_lovasz_ce_loss.3
$region0: #{combined_dice_lovasz_ce_loss.3}
  #allocation0 [shape = 'u32[]', space=smem, size = 0x4, offset = 0x4, fixed_abs, tag = 'smem constant byte address 0x4 - core index']
  #allocation1 [shape = 'u32[144,128]{1,0:T(1,128)}', space=vmem, size = 0x12000, scoped, tag = 'internal scratch']
  #allocation2 [shape = 'bf16[128,128]{1,0:T(8,128)(2,1)}', space=vmem, size = 0x8000, scoped, tag = 'scratch operand']
  #allocation3 [shape = 'f32[4,1]{1,0:T(4,128)}', space=vmem, size = 0x800, scoped, tag = 'scratch operand']
  #allocation4 [shape = 'f32[4,1]{1,0:T(4,128)}', space=vmem, size = 0x800, scoped, tag = 'scratch operand']
  #allocation5 [shape = 'f32[4,512]{1,0:T(4,128)}', space=vmem, size = 0x2000, scoped, tag = 'scratch operand']
  %s0 = inlined_call_operand.vmem [shape: f32[4,1], index: 0, kind: input, shape index: {}]
  %s1 = inlined_call_operand.vmem [shape: bf16[4,512], index: 1, kind: input, shape index: {}]
  %s2 = inlined_call_operand.vmem [shape: bf16[4,512], index: 2, kind: input, shape index: {}]
  %s3 = inlined_call_operand.vmem [shape: f32[4,1], index: 3, kind: output, shape index: {}]
  %s4 = sld [smem:[#allocation0]]
  $region30: #{combined_dice_lovasz_ce_loss.3} parent=0
    _
  %s6 = ssub.s32 1, %s4
  %s7 = scalar_select 0, %s6, %s4
  // Predicated region
  $region2: #{combined_dice_lovasz_ce_loss.3} parent=0 // pred_check
    _
  $region3: #{combined_dice_lovasz_ce_loss.3} parent=0 // pred_check_branch
    %9 = sbr.rel (0) target = $region5
  $region4: #{combined_dice_lovasz_ce_loss.3} parent=0 // pred_region
    _
  $region5: #{combined_dice_lovasz_ce_loss.3} parent=0 // pred_fallthru
    _
  // Predicated region
  $region6: #{combined_dice_lovasz_ce_loss.3} parent=0 // pred_check
    _
  $region7: #{combined_dice_lovasz_ce_loss.3} parent=0 // pred_check_branch
    %11 = sbr.rel (0) target = $region9
  $region8: #{combined_dice_lovasz_ce_loss.3} parent=0 // pred_region
    _
  $region9: #{combined_dice_lovasz_ce_loss.3} parent=0 // pred_fallthru
    _
  // Predicated region
  $region10: #{combined_dice_lovasz_ce_loss.3} parent=0 // pred_check
    _
  $region11: #{combined_dice_lovasz_ce_loss.3} parent=0 // pred_check_branch
    %13 = sbr.rel (0) target = $region13
  $region12: #{combined_dice_lovasz_ce_loss.3} parent=0 // pred_region
    _
  $region13: #{combined_dice_lovasz_ce_loss.3} parent=0 // pred_fallthru
    _
  %p15 = scmp.eq.s32.totalorder 0, 0
  // Predicated region
  $region14: #{combined_dice_lovasz_ce_loss.3} parent=0 // pred_check
    %p16 = pneg %p15
  $region15: #{combined_dice_lovasz_ce_loss.3} parent=0 // pred_check_branch
    %18 = sbr.rel (%p16) target = $region17
  $region16: #{combined_dice_lovasz_ce_loss.3} parent=0 // pred_region
    %v19 = vlaneseq
    %v20 = vshrl.u32 %v19, 7
    %v21 = vadd.s32 %v20, 8
    %v22 = vadd.s32 %v20, 16
    %v23 = vadd.s32 %v20, 24
    %v24 = vadd.s32 %v20, 32
    %v25 = vadd.s32 %v20, 40
    %v26 = vadd.s32 %v20, 48
    %v27 = vadd.s32 %v20, 56
    %v28 = vadd.s32 %v20, 64
    %v29 = vadd.s32 %v20, 72
    %v30 = vadd.s32 %v20, 80
    %v31 = vadd.s32 %v20, 88
    %v32 = vadd.s32 %v20, 96
    %v33 = vadd.s32 %v20, 104
    %v34 = vadd.s32 %v20, 112
    %v35 = vadd.s32 %v20, 120
    %v36 = vlaneseq
    %v37 = vand.u32 %v36, 127
    %vm38 = vcmp.le.s32.totalorder %v20, %v37
    %vm39 = vcmp.le.s32.totalorder %v21, %v37
    %vm40 = vcmp.le.s32.totalorder %v22, %v37
    %vm41 = vcmp.le.s32.totalorder %v23, %v37
    %vm42 = vcmp.le.s32.totalorder %v24, %v37
    %vm43 = vcmp.le.s32.totalorder %v25, %v37
    %vm44 = vcmp.le.s32.totalorder %v26, %v37
    %vm45 = vcmp.le.s32.totalorder %v27, %v37
    %vm46 = vcmp.le.s32.totalorder %v28, %v37
    %vm47 = vcmp.le.s32.totalorder %v29, %v37
    %vm48 = vcmp.le.s32.totalorder %v30, %v37
    %vm49 = vcmp.le.s32.totalorder %v31, %v37
    %vm50 = vcmp.le.s32.totalorder %v32, %v37
    %vm51 = vcmp.le.s32.totalorder %v33, %v37
    %vm52 = vcmp.le.s32.totalorder %v34, %v37
    %vm53 = vcmp.le.s32.totalorder %v35, %v37
    %v54 = vsel %vm38, 1, 0
    %v55 = vsel %vm39, 1, 0
    %v56 = vsel %vm40, 1, 0
    %v57 = vsel %vm41, 1, 0
    %v58 = vsel %vm42, 1, 0
    %v59 = vsel %vm43, 1, 0
    %v60 = vsel %vm44, 1, 0
    %v61 = vsel %vm45, 1, 0
    %v62 = vsel %vm46, 1, 0
    %v63 = vsel %vm47, 1, 0
    %v64 = vsel %vm48, 1, 0
    %v65 = vsel %vm49, 1, 0
    %v66 = vsel %vm50, 1, 0
    %v67 = vsel %vm51, 1, 0
    %v68 = vsel %vm52, 1, 0
    %v69 = vsel %vm53, 1, 0
    %v70 = vcvt.s32.f32 %v54
    %v71 = vcvt.s32.f32 %v55
    %v72 = vcvt.s32.f32 %v56
    %v73 = vcvt.s32.f32 %v57
    %v74 = vcvt.s32.f32 %v58
    %v75 = vcvt.s32.f32 %v59
    %v76 = vcvt.s32.f32 %v60
    %v77 = vcvt.s32.f32 %v61
    %v78 = vcvt.s32.f32 %v62
    %v79 = vcvt.s32.f32 %v63
    %v80 = vcvt.s32.f32 %v64
    %v81 = vcvt.s32.f32 %v65
    %v82 = vcvt.s32.f32 %v66
    %v83 = vcvt.s32.f32 %v67
    %v84 = vcvt.s32.f32 %v68
    %v85 = vcvt.s32.f32 %v69
    %v86 = vpack.c.bf16 %v71, %v70
    %v87 = vpack.c.bf16 %v73, %v72
    %v88 = vpack.c.bf16 %v75, %v74
    %v89 = vpack.c.bf16 %v77, %v76
    %v90 = vpack.c.bf16 %v79, %v78
    %v91 = vpack.c.bf16 %v81, %v80
    %v92 = vpack.c.bf16 %v83, %v82
    %v93 = vpack.c.bf16 %v85, %v84
    %v102 = vunpack.c.l.b16 %v86
    %v103 = vunpack.c.h.b16 %v86
    %v104 = vunpack.c.l.b16 %v87
    %v105 = vunpack.c.h.b16 %v87
    %v106 = vunpack.c.l.b16 %v88
    %v107 = vunpack.c.h.b16 %v88
    %v108 = vunpack.c.l.b16 %v89
    %v109 = vunpack.c.h.b16 %v89
    %v110 = vunpack.c.l.b16 %v90
    %v111 = vunpack.c.h.b16 %v90
    %v112 = vunpack.c.l.b16 %v91
    %v113 = vunpack.c.h.b16 %v91
    %v114 = vunpack.c.l.b16 %v92
    %v115 = vunpack.c.h.b16 %v92
    %v116 = vunpack.c.l.b16 %v93
    %v117 = vunpack.c.h.b16 %v93
    %v118 = vpack.c.b16 %v102, %v102
    %v119 = vpack.c.b16 %v103, %v103
    %v120 = vpack.c.b16 %v104, %v104
    %v121 = vpack.c.b16 %v105, %v105
    %v122 = vpack.c.b16 %v106, %v106
    %v123 = vpack.c.b16 %v107, %v107
    %v124 = vpack.c.b16 %v108, %v108
    %v125 = vpack.c.b16 %v109, %v109
    %v126 = vpack.c.b16 %v110, %v110
    %v127 = vpack.c.b16 %v111, %v111
    %v128 = vpack.c.b16 %v112, %v112
    %v129 = vpack.c.b16 %v113, %v113
    %v130 = vpack.c.b16 %v114, %v114
    %v131 = vpack.c.b16 %v115, %v115
    %v132 = vpack.c.b16 %v116, %v116
    %v133 = vpack.c.b16 %v117, %v117
    %150 = vst [vmem:[#allocation2] sm:$0xf] %v118
    %151 = vst [vmem:[#allocation2 + $0x4] sm:$0xf] %v119
    %152 = vst [vmem:[#allocation2 + $0x8] sm:$0xf] %v120
    %153 = vst [vmem:[#allocation2 + $0xc] sm:$0xf] %v121
    %154 = vst [vmem:[#allocation2 + $0x10] sm:$0xf] %v122
    %155 = vst [vmem:[#allocation2 + $0x14] sm:$0xf] %v123
    %156 = vst [vmem:[#allocation2 + $0x18] sm:$0xf] %v124
    %157 = vst [vmem:[#allocation2 + $0x1c] sm:$0xf] %v125
    %158 = vst [vmem:[#allocation2 + $0x20] sm:$0xf] %v126
    %159 = vst [vmem:[#allocation2 + $0x24] sm:$0xf] %v127
    %160 = vst [vmem:[#allocation2 + $0x28] sm:$0xf] %v128
    %161 = vst [vmem:[#allocation2 + $0x2c] sm:$0xf] %v129
    %162 = vst [vmem:[#allocation2 + $0x30] sm:$0xf] %v130
    %163 = vst [vmem:[#allocation2 + $0x34] sm:$0xf] %v131
    %164 = vst [vmem:[#allocation2 + $0x38] sm:$0xf] %v132
    %165 = vst [vmem:[#allocation2 + $0x3c] sm:$0xf] %v133
    %vm166 = vcmask 3072
    %167 = vst.msk [vmem:[#allocation3] sm:$0xf] %vm166, 0.0
    %168 = vst.msk [vmem:[#allocation4] sm:$0xf] %vm166, 0.0
    %169 = vst [vmem:[#allocation5] sm:$0xff] 0.0
    %170 = vst [vmem:[#allocation5 + $0x8] sm:$0xff] 0.0
  $region17: #{combined_dice_lovasz_ce_loss.3} parent=0 // pred_fallthru
    _
  %v171 = vld [vmem:[%s2] sm:$0xff]
  %v172 = vld [vmem:[%s1] sm:$0xff]
  %v173 = vunpack.c.l.bf16 %v172
  %v174 = vunpack.c.h.bf16 %v172
  %v175 = vld [vmem:[%s0] sm:$0xf]
  %v176 = vld [vmem:[#allocation2] sm:$0xf]
  %v177 = vld [vmem:[#allocation2 + $0x4] sm:$0xf]
  %v178 = vld [vmem:[#allocation2 + $0x8] sm:$0xf]
  %v179 = vld [vmem:[#allocation2 + $0xc] sm:$0xf]
  %v180 = vld [vmem:[#allocation2 + $0x10] sm:$0xf]
  %v181 = vld [vmem:[#allocation2 + $0x14] sm:$0xf]
  %v182 = vld [vmem:[#allocation2 + $0x18] sm:$0xf]
  %v183 = vld [vmem:[#allocation2 + $0x1c] sm:$0xf]
  %v184 = vld [vmem:[#allocation2 + $0x20] sm:$0xf]
  %v185 = vld [vmem:[#allocation2 + $0x24] sm:$0xf]
  %v186 = vld [vmem:[#allocation2 + $0x28] sm:$0xf]
  %v187 = vld [vmem:[#allocation2 + $0x2c] sm:$0xf]
  %v188 = vld [vmem:[#allocation2 + $0x30] sm:$0xf]
  %v189 = vld [vmem:[#allocation2 + $0x34] sm:$0xf]
  %v190 = vld [vmem:[#allocation2 + $0x38] sm:$0xf]
  %v191 = vld [vmem:[#allocation2 + $0x3c] sm:$0xf]
  %v192 = vld [vmem:[#allocation3] sm:$0xf]
  %v209 = vunpack.c.l.b16 %v176
  %v210 = vunpack.c.l.b16 %v177
  %v211 = vunpack.c.l.b16 %v178
  %v212 = vunpack.c.l.b16 %v179
  %v213 = vunpack.c.l.b16 %v180
  %v214 = vunpack.c.l.b16 %v181
  %v215 = vunpack.c.l.b16 %v182
  %v216 = vunpack.c.l.b16 %v183
  %v217 = vunpack.c.l.b16 %v184
  %v218 = vunpack.c.l.b16 %v185
  %v219 = vunpack.c.l.b16 %v186
  %v220 = vunpack.c.l.b16 %v187
  %v221 = vunpack.c.l.b16 %v188
  %v222 = vunpack.c.l.b16 %v189
  %v223 = vunpack.c.l.b16 %v190
  %v224 = vunpack.c.l.b16 %v191
  %v225 = vpack.c.b16 %v210, %v209
  %v226 = vpack.c.b16 %v212, %v211
  %v227 = vpack.c.b16 %v214, %v213
  %v228 = vpack.c.b16 %v216, %v215
  %v229 = vpack.c.b16 %v218, %v217
  %v230 = vpack.c.b16 %v220, %v219
  %v231 = vpack.c.b16 %v222, %v221
  %v232 = vpack.c.b16 %v224, %v223
  %241 = vmatprep.subr.bf16.mxu0 0
  %242 = vmatpush1.bf16.msra.mxu0 %v232
  %243 = vmatprep.subr.bf16.mxu0 0
  %244 = vmatpush1.bf16.msra.mxu0 %v231
  %245 = vmatprep.subr.bf16.mxu0 0
  %246 = vmatpush1.bf16.msra.mxu0 %v230
  %247 = vmatprep.subr.bf16.mxu0 0
  %248 = vmatpush1.bf16.msra.mxu0 %v229
  %249 = vmatprep.subr.bf16.mxu0 0
  %250 = vmatpush1.bf16.msra.mxu0 %v228
  %251 = vmatprep.subr.bf16.mxu0 0
  %252 = vmatpush1.bf16.msra.mxu0 %v227
  %253 = vmatprep.subr.bf16.mxu0 0
  %254 = vmatpush1.bf16.msra.mxu0 %v226
  %255 = vmatprep.subr.bf16.mxu0 0
  %256 = vmatpush1.bf16.msra.mxu0 %v225
  %257 = vmatprep.subr.bf16.mxu0 0
  %258 = vmatpush2.bf16.msra.mxu0 0
  %259 = vmatprep.subr.bf16.mxu0 0
  %260 = vmatpush2.bf16.msra.mxu0 0
  %261 = vmatprep.subr.bf16.mxu0 0
  %262 = vmatpush2.bf16.msra.mxu0 0
  %263 = vmatprep.subr.bf16.mxu0 0
  %264 = vmatpush2.bf16.msra.mxu0 0
  %265 = vmatprep.subr.bf16.mxu0 0
  %266 = vmatpush2.bf16.msra.mxu0 0
  %267 = vmatprep.subr.bf16.mxu0 0
  %268 = vmatpush2.bf16.msra.mxu0 0
  %269 = vmatprep.subr.bf16.mxu0 0
  %270 = vmatpush2.bf16.msra.mxu0 0
  %271 = vmatprep.subr.bf16.mxu0 0
  %272 = vmatpush2.bf16.msra.mxu0 0
  %273 = vmatprep.mubr.bf16.mxu0 0
  %274 = vmatmul.mubr.bf16.gmra.mxu0 %v171
  %v275 = vpop.f32.mrf.mxu0
  %v276 = vadd.f32 0.0, %v275
  %v277 = vpop.f32.mrf.mxu0
  %v278 = vpop.f32.mrf.mxu0
  %v279 = vpop.f32.mrf.mxu0
  %280 = vdwg.mxu0
  %282 = vset.pattern.permute.xlu0 0
  %283 = vperm.xlu0 %282, %v192
  %v284 = vpop.permute.xlu0 %283
  %v286 = vadd.f32 %v276, %v284
  %288 = vrot.lane.b32.xlu0 %v276, 1
  %v289 = vpop.permute.xlu0 %288
  %v291 = vadd.f32 %v192, %v289
  %v294 = vunpack.c.l.s4 1983009808
  %v295 = vunpack.c.0.s8 %v294
  %v296 = vlaneseq
  %v297 = vshrl.u32 %v296, 7
  %v298 = vsub.s32 %v295, %v297
  %v299 = vrot.slane %v171, %v298
  %v300 = vcombine.high %v299, %v299
  %302 = vmatprep.subr.bf16.mxu0 0
  %303 = vmatpush1.bf16.msra.mxu0 %v232
  %304 = vmatprep.subr.bf16.mxu0 0
  %305 = vmatpush1.bf16.msra.mxu0 %v231
  %306 = vmatprep.subr.bf16.mxu0 0
  %307 = vmatpush1.bf16.msra.mxu0 %v230
  %308 = vmatprep.subr.bf16.mxu0 0
  %309 = vmatpush1.bf16.msra.mxu0 %v229
  %310 = vmatprep.subr.bf16.mxu0 0
  %311 = vmatpush1.bf16.msra.mxu0 %v228
  %312 = vmatprep.subr.bf16.mxu0 0
  %313 = vmatpush1.bf16.msra.mxu0 %v227
  %314 = vmatprep.subr.bf16.mxu0 0
  %315 = vmatpush1.bf16.msra.mxu0 %v226
  %316 = vmatprep.subr.bf16.mxu0 0
  %317 = vmatpush1.bf16.msra.mxu0 %v225
  %318 = vmatprep.subr.bf16.mxu0 0
  %319 = vmatpush2.bf16.msra.mxu0 0
  %320 = vmatprep.subr.bf16.mxu0 0
  %321 = vmatpush2.bf16.msra.mxu0 0
  %322 = vmatprep.subr.bf16.mxu0 0
  %323 = vmatpush2.bf16.msra.mxu0 0
  %324 = vmatprep.subr.bf16.mxu0 0
  %325 = vmatpush2.bf16.msra.mxu0 0
  %326 = vmatprep.subr.bf16.mxu0 0
  %327 = vmatpush2.bf16.msra.mxu0 0
  %328 = vmatprep.subr.bf16.mxu0 0
  %329 = vmatpush2.bf16.msra.mxu0 0
  %330 = vmatprep.subr.bf16.mxu0 0
  %331 = vmatpush2.bf16.msra.mxu0 0
  %332 = vmatprep.subr.bf16.mxu0 0
  %333 = vmatpush2.bf16.msra.mxu0 0
  %334 = vmatprep.mubr.bf16.mxu0 0
  %335 = vmatmul.mubr.bf16.gmra.mxu0 %v300
  %v336 = vpop.f32.mrf.mxu0
  %v337 = vadd.f32 0.0, %v336
  %v338 = vpop.f32.mrf.mxu0
  %v339 = vpop.f32.mrf.mxu0
  %v340 = vpop.f32.mrf.mxu0
  %341 = vdwg.mxu0
  %343 = vset.pattern.permute.xlu0 0
  %344 = vperm.xlu0 %343, %v291
  %v345 = vpop.permute.xlu0 %344
  %v347 = vadd.f32 %v337, %v345
  %349 = vrot.lane.b32.xlu0 %v337, 1
  %v350 = vpop.permute.xlu0 %349
  %v352 = vadd.f32 %v291, %v350
  %v353 = vcombine.high %v171, %v171
  %v355 = vunpack.c.l.s4 1983009808
  %v356 = vunpack.c.0.s8 %v355
  %v357 = vlaneseq
  %v358 = vshrl.u32 %v357, 7
  %v359 = vsub.s32 %v356, %v358
  %v360 = vrot.slane %v353, %v359
  %362 = vmatprep.subr.bf16.mxu0 0
  %363 = vmatpush1.bf16.msra.mxu0 %v232
  %364 = vmatprep.subr.bf16.mxu0 0
  %365 = vmatpush1.bf16.msra.mxu0 %v231
  %366 = vmatprep.subr.bf16.mxu0 0
  %367 = vmatpush1.bf16.msra.mxu0 %v230
  %368 = vmatprep.subr.bf16.mxu0 0
  %369 = vmatpush1.bf16.msra.mxu0 %v229
  %370 = vmatprep.subr.bf16.mxu0 0
  %371 = vmatpush1.bf16.msra.mxu0 %v228
  %372 = vmatprep.subr.bf16.mxu0 0
  %373 = vmatpush1.bf16.msra.mxu0 %v227
  %374 = vmatprep.subr.bf16.mxu0 0
  %375 = vmatpush1.bf16.msra.mxu0 %v226
  %376 = vmatprep.subr.bf16.mxu0 0
  %377 = vmatpush1.bf16.msra.mxu0 %v225
  %378 = vmatprep.subr.bf16.mxu0 0
  %379 = vmatpush2.bf16.msra.mxu0 0
  %380 = vmatprep.subr.bf16.mxu0 0
  %381 = vmatpush2.bf16.msra.mxu0 0
  %382 = vmatprep.subr.bf16.mxu0 0
  %383 = vmatpush2.bf16.msra.mxu0 0
  %384 = vmatprep.subr.bf16.mxu0 0
  %385 = vmatpush2.bf16.msra.mxu0 0
  %386 = vmatprep.subr.bf16.mxu0 0
  %387 = vmatpush2.bf16.msra.mxu0 0
  %388 = vmatprep.subr.bf16.mxu0 0
  %389 = vmatpush2.bf16.msra.mxu0 0
  %390 = vmatprep.subr.bf16.mxu0 0
  %391 = vmatpush2.bf16.msra.mxu0 0
  %392 = vmatprep.subr.bf16.mxu0 0
  %393 = vmatpush2.bf16.msra.mxu0 0
  %394 = vmatprep.mubr.bf16.mxu0 0
  %395 = vmatmul.mubr.bf16.gmra.mxu0 %v360
  %v396 = vpop.f32.mrf.mxu0
  %v397 = vadd.f32 0.0, %v396
  %v398 = vpop.f32.mrf.mxu0
  %v399 = vpop.f32.mrf.mxu0
  %v400 = vpop.f32.mrf.mxu0
  %401 = vdwg.mxu0
  %403 = vset.pattern.permute.xlu0 0
  %404 = vperm.xlu0 %403, %v352
  %v405 = vpop.permute.xlu0 %404
  %v407 = vadd.f32 %v397, %v405
  %409 = vrot.lane.b32.xlu0 %v397, 1
  %v410 = vpop.permute.xlu0 %409
  %v412 = vadd.f32 %v352, %v410
  %v413 = vcombine.high %v360, %v360
  %415 = vmatprep.subr.bf16.mxu0 0
  %416 = vmatpush1.bf16.msra.mxu0 %v232
  %417 = vmatprep.subr.bf16.mxu0 0
  %418 = vmatpush1.bf16.msra.mxu0 %v231
  %419 = vmatprep.subr.bf16.mxu0 0
  %420 = vmatpush1.bf16.msra.mxu0 %v230
  %421 = vmatprep.subr.bf16.mxu0 0
  %422 = vmatpush1.bf16.msra.mxu0 %v229
  %423 = vmatprep.subr.bf16.mxu0 0
  %424 = vmatpush1.bf16.msra.mxu0 %v228
  %425 = vmatprep.subr.bf16.mxu0 0
  %426 = vmatpush1.bf16.msra.mxu0 %v227
  %427 = vmatprep.subr.bf16.mxu0 0
  %428 = vmatpush1.bf16.msra.mxu0 %v226
  %429 = vmatprep.subr.bf16.mxu0 0
  %430 = vmatpush1.bf16.msra.mxu0 %v225
  %431 = vmatprep.subr.bf16.mxu0 0
  %432 = vmatpush2.bf16.msra.mxu0 0
  %433 = vmatprep.subr.bf16.mxu0 0
  %434 = vmatpush2.bf16.msra.mxu0 0
  %435 = vmatprep.subr.bf16.mxu0 0
  %436 = vmatpush2.bf16.msra.mxu0 0
  %437 = vmatprep.subr.bf16.mxu0 0
  %438 = vmatpush2.bf16.msra.mxu0 0
  %439 = vmatprep.subr.bf16.mxu0 0
  %440 = vmatpush2.bf16.msra.mxu0 0
  %441 = vmatprep.subr.bf16.mxu0 0
  %442 = vmatpush2.bf16.msra.mxu0 0
  %443 = vmatprep.subr.bf16.mxu0 0
  %444 = vmatpush2.bf16.msra.mxu0 0
  %445 = vmatprep.subr.bf16.mxu0 0
  %446 = vmatpush2.bf16.msra.mxu0 0
  %447 = vmatprep.mubr.bf16.mxu0 0
  %448 = vmatmul.mubr.bf16.gmra.mxu0 %v413
  %v449 = vpop.f32.mrf.mxu0
  %v450 = vadd.f32 0.0, %v449
  %v451 = vpop.f32.mrf.mxu0
  %v452 = vpop.f32.mrf.mxu0
  %v453 = vpop.f32.mrf.mxu0
  %454 = vdwg.mxu0
  %456 = vset.pattern.permute.xlu0 0
  %457 = vperm.xlu0 %456, %v412
  %v458 = vpop.permute.xlu0 %457
  %v460 = vadd.f32 %v450, %v458
  %462 = vrot.lane.b32.xlu0 %v450, 1
  %v463 = vpop.permute.xlu0 %462
  %v465 = vadd.f32 %v412, %v463
  %v466 = vlaneseq
  %v467 = vand.u32 %v466, 127
  %v468 = vadd.s32 %v467, 128
  %v469 = vadd.s32 %v467, 256
  %v470 = vadd.s32 %v467, 384
  %s471 = smul.u32 0, 512
  %v472 = vstv %s471
  %v473 = vadd.s32 %v472, %v467
  %v474 = vadd.s32 %v472, %v468
  %v475 = vadd.s32 %v472, %v469
  %v476 = vadd.s32 %v472, %v470
  %v477 = vadd.s32 %v473, 1
  %v478 = vadd.s32 %v474, 1
  %v479 = vadd.s32 %v475, 1
  %v480 = vadd.s32 %v476, 1
  %v481 = vcvt.s32.f32 %v477
  %v482 = vcvt.s32.f32 %v478
  %v483 = vcvt.s32.f32 %v479
  %v484 = vcvt.s32.f32 %v480
  %v485 = vsub.f32 %v481, %v286
  %v486 = vsub.f32 %v482, %v347
  %v487 = vsub.f32 %v483, %v407
  %v488 = vsub.f32 %v484, %v460
  %490 = vset.pattern.permute.xlu0 0
  %491 = vperm.xlu0 %490, %v175
  %v492 = vpop.permute.xlu0 %491
  %v494 = vadd.f32 %v492, %v485
  %v495 = vadd.f32 %v492, %v486
  %v496 = vadd.f32 %v492, %v487
  %v497 = vadd.f32 %v492, %v488
  %v498 = vsub.f32 %v492, %v286
  %v499 = vsub.f32 %v492, %v347
  %v500 = vsub.f32 %v492, %v407
  %v501 = vsub.f32 %v492, %v460
  %v502 = vrcp.pop %v494
  %v503 = vrcp.pop %v495
  %v504 = vrcp.pop %v496
  %v505 = vrcp.pop %v497
  %v506 = vmul.f32 %v498, %v502
  %v507 = vmul.f32 %v499, %v503
  %v508 = vmul.f32 %v500, %v504
  %v509 = vmul.f32 %v501, %v505
  %v510 = vsub.f32 1.0, %v506
  %v511 = vsub.f32 1.0, %v507
  %v512 = vsub.f32 1.0, %v508
  %v513 = vsub.f32 1.0, %v509
  %514 = vrot.lane.b32.xlu0 %v510, 1
  %v515 = vpop.permute.xlu0 %514
  %516 = vrot.lane.b32.xlu0 %v511, 1
  %v517 = vpop.permute.xlu0 %516
  %518 = vrot.lane.b32.xlu0 %v512, 1
  %v519 = vpop.permute.xlu0 %518
  %520 = vrot.lane.b32.xlu0 %v513, 1
  %v521 = vpop.permute.xlu0 %520
  %vm522 = vcmp.lt.s32.totalorder %v467, 1
  %v523 = vsel %vm522, %v519, %v521
  %v524 = vsel %vm522, %v517, %v519
  %v525 = vsel %vm522, %v515, %v517
  %v526 = vsel %vm522, %v521, %v515
  %vm527 = vcmp.eq.s32.totalorder %v467, 0
  %vm528 = vcmp.eq.s32.totalorder %v468, 0
  %vm529 = vcmp.eq.s32.totalorder %v469, 0
  %vm530 = vcmp.eq.s32.totalorder %v470, 0
  %v531 = vld [vmem:[#allocation4] sm:$0xf]
  %533 = vset.pattern.permute.xlu0 0
  %534 = vperm.xlu0 %533, %v531
  %v535 = vpop.permute.xlu0 %534
  %v537 = vsel %vm527, %v535, %v526
  %v538 = vsel %vm528, %v535, %v525
  %v539 = vsel %vm529, %v535, %v524
  %v540 = vsel %vm530, %v535, %v523
  %v541 = vld [vmem:[#allocation5] sm:$0xff]
  %v542 = vld [vmem:[#allocation5 + $0x8] sm:$0xff]
  %v543 = vsub.f32 %v537, %v510
  %v544 = vsub.f32 %v538, %v511
  %v545 = vsub.f32 %v539, %v512
  %v546 = vsub.f32 %v540, %v513
  %v551 = vcombine.low %v543, %v544
  %v552 = vcombine.low %v545, %v546
  %v555 = vmul.f32 %v173, %v551
  %v556 = vmul.f32 %v174, %v552
  %v557 = vadd.f32 %v541, %v555
  %v558 = vadd.f32 %v542, %v556
  %559 = vst [vmem:[#allocation5] sm:$0xff] %v557
  %560 = vst [vmem:[#allocation5 + $0x8] sm:$0xff] %v558
  %vm561 = vcmask 3072
  %562 = vst.msk [vmem:[#allocation3] sm:$0xf] %vm561, %v465
  %564 = vrot.lane.b32.xlu0 %v513, 1
  %v565 = vpop.permute.xlu0 %564
  %567 = vst.msk [vmem:[#allocation4] sm:$0xf] %vm561, %v565
  // Predicated region
  $region18: #{combined_dice_lovasz_ce_loss.3} parent=0 // pred_check
    %p568 = pneg %p15
  $region19: #{combined_dice_lovasz_ce_loss.3} parent=0 // pred_check_branch
    %570 = sbr.rel (%p568) target = $region21
  $region20: #{combined_dice_lovasz_ce_loss.3} parent=0 // pred_region
    %v571 = vld [vmem:[#allocation5] sm:$0xff]
    %v572 = vld [vmem:[#allocation5 + $0x8] sm:$0xff]
    %v575 = vcombine.high %v571, %v571
    %v576 = vcombine.high %v572, %v572
    %vm579 = vcmask 1043456
    %v580 = vsel %vm579, %v571, 0.0
    %v581 = vsel %vm579, %v575, 0.0
    %v582 = vadd.f32 %v580, %v581
    %v583 = vsel %vm579, %v572, 0.0
    %v584 = vadd.f32 %v582, %v583
    %v585 = vsel %vm579, %v576, 0.0
    %v586 = vadd.f32 %v584, %v585
    %587 = vadd.xlane.f32.xlu0 %v586
    %v588 = vpop.xlane.xlu0 %587
    %589 = vst.msk [vmem:[%s3] sm:$0xf] %vm561, %v588
  $region21: #{combined_dice_lovasz_ce_loss.3} parent=0 // pred_fallthru
    _
  // Predicated region
  $region22: #{combined_dice_lovasz_ce_loss.3} parent=0 // pred_check
    _
  $region23: #{combined_dice_lovasz_ce_loss.3} parent=0 // pred_check_branch
    %591 = sbr.rel (0) target = $region25
  $region24: #{combined_dice_lovasz_ce_loss.3} parent=0 // pred_region
    _
  $region25: #{combined_dice_lovasz_ce_loss.3} parent=0 // pred_fallthru
    _
  // Predicated region
  $region26: #{combined_dice_lovasz_ce_loss.3} parent=0 // pred_check
    _
  $region27: #{combined_dice_lovasz_ce_loss.3} parent=0 // pred_check_branch
    %593 = sbr.rel (0) target = $region29
  $region28: #{combined_dice_lovasz_ce_loss.3} parent=0 // pred_region
    _
  $region29: #{combined_dice_lovasz_ce_loss.3} parent=0 // pred_fallthru
    _

</llo_original>
